<compile_context>
chip_gen: v6e
topology: v6e:2x2x1
jax: 0.10.0
libtpu: 0.0.40
codegen_flags: <defaults>
</compile_context>

<pallas_src>
import functools

import jax
import jax.numpy as jnp
from jax.experimental import pallas as pl
from jax.experimental.pallas import tpu as pltpu


def _spatial_attention_kernel(wm_ref, x_ref, o_ref, sum_ref, max_ref, *, K, W, HW):
    # wm_ref  : VMEM (2*K*K, HW)  per-tap conv weight * border mask (1/C folded in)
    # x_ref   : VMEM (nb, cb, HW) one (batch, channel) tile, spatial flattened
    # o_ref   : VMEM (nb, HW)     sigmoid(conv) output, spatial flattened
    # sum_ref : VMEM (nb, HW) f32 running channel sum (scratch)
    # max_ref : VMEM (nb, HW) f32 running channel max (scratch)
    k = pl.program_id(1)

    @pl.when(k == 0)
    def _init():
        sum_ref[...] = jnp.zeros_like(sum_ref)
        max_ref[...] = jnp.full_like(max_ref, -jnp.inf)

    x = x_ref[...].astype(jnp.float32)                      # (nb, cb, HW)
    sum_ref[...] += jnp.sum(x, axis=1)
    max_ref[...] = jnp.maximum(max_ref[...], jnp.max(x, axis=1))

    @pl.when(k == pl.num_programs(1) - 1)
    def _finalize():
        P = K // 2
        # 1/C is folded into the avg-channel weight rows, so the raw channel
        # sum is fed directly (conv is linear).
        feats = (sum_ref[...], max_ref[...])                # each (nb, HW)
        acc = None
        # Fully unrolled 2*K*K taps: one lane-rotate (XLU) + one mul + one add
        # (VPU) per tap.  Border handling is folded into the precomputed
        # weight*mask rows, so the circular wrap of the roll never leaks in.
        for c, feat in enumerate(feats):
            for ky in range(K):
                for kx in range(K):
                    s = (ky - P) * W + (kx - P)             # flat source offset
                    shifted = feat if s == 0 else pltpu.roll(feat, (-s) % HW, axis=1)
                    idx = c * K * K + ky * K + kx
                    term = shifted * wm_ref[idx:idx + 1, :]  # (nb,HW) * (1,HW)
                    acc = term if acc is None else acc + term
        o_ref[...] = jax.nn.sigmoid(acc).astype(o_ref.dtype)


def _valid_tiles(total):
    """Tile sizes legal for a dim landing in the last two block dims:
    the full extent, or any multiple-of-8 divisor of it (ascending)."""
    tiles = {total}
    tiles.update(d for d in range(8, total, 8) if total % d == 0)
    return sorted(tiles)


def _choose_tiles(N, C, HW, itemsize, budget_bytes):
    """Pick (nb, cb) so the x block nb*cb*HW*itemsize stays under budget while
    keeping blocks as large as possible (amortise ~0.35us per grid step)."""
    n_tiles = _valid_tiles(N)
    c_tiles = _valid_tiles(C)
    cb_min = c_tiles[0]
    nb = max((t for t in n_tiles if t * cb_min * HW * itemsize <= budget_bytes),
             default=n_tiles[0])
    cb = max((t for t in c_tiles if nb * t * HW * itemsize <= budget_bytes),
             default=cb_min)
    return nb, cb


def spatial_attention(x, conv_weight, *, vmem_block_budget_bytes=4 * 1024 * 1024):
    """x: (N, C, H, W); conv_weight: (1, 2, K, K) -> (N, 1, H, W) attention map."""
    N, C, H, W = x.shape
    K = conv_weight.shape[-1]
    P = K // 2
    HW = H * W
    itemsize = jnp.dtype(x.dtype).itemsize

    # --- tile sizing (kept well under the smallest default scoped VMEM) -----
    nb, cb = _choose_tiles(N, C, HW, itemsize, vmem_block_budget_bytes)

    # --- precompute per-tap (weight * border-validity mask) rows -------------
    # Row c*K*K + ky*K + kx holds, for every flattened output position p, the
    # conv weight of tap (c,ky,kx) if that tap's source pixel is inside the
    # image, else 0.  The 1/C of the channel mean is folded into c==0 rows.
    pos = jnp.arange(HW, dtype=jnp.int32)
    row = pos // W
    col = pos % W
    w32 = conv_weight.astype(jnp.float32)
    chan_scale = (1.0 / C, 1.0)              # c=0: channel mean, c=1: channel max
    wm_rows = []
    for c in range(2):
        for ky in range(K):
            for kx in range(K):
                dy, dx = ky - P, kx - P
                valid = ((row + dy >= 0) & (row + dy < H) &
                         (col + dx >= 0) & (col + dx < W))
                wm_rows.append(valid.astype(jnp.float32)
                               * (w32[0, c, ky, kx] * chan_scale[c]))
    wm = jnp.stack(wm_rows, axis=0)                          # (2*K*K, HW)

    x_flat = x.reshape(N, C, HW)
    kernel = functools.partial(_spatial_attention_kernel, K=K, W=W, HW=HW)

    out_flat = pl.pallas_call(
        kernel,
        out_shape=jax.ShapeDtypeStruct((N, HW), x.dtype),
        grid_spec=pltpu.PrefetchScalarGridSpec(
            num_scalar_prefetch=0,
            grid=(N // nb, C // cb),
            in_specs=[
                pl.BlockSpec((2 * K * K, HW), lambda n, k: (0, 0)),   # weight*mask
                pl.BlockSpec((nb, cb, HW), lambda n, k: (n, k, 0)),   # x tile
            ],
            out_specs=pl.BlockSpec((nb, HW), lambda n, k: (n, 0)),
            scratch_shapes=[
                pltpu.VMEM((nb, HW), jnp.float32),   # running channel sum
                pltpu.VMEM((nb, HW), jnp.float32),   # running channel max
            ],
        ),
        compiler_params=pltpu.CompilerParams(
            dimension_semantics=("parallel", "arbitrary"),
        ),
    )(wm, x_flat)

    return out_flat.reshape(N, 1, H, W)


def _reference(x, conv_weight):
    P = conv_weight.shape[-1] // 2
    avg = jnp.mean(x, axis=1, keepdims=True)
    mx = jnp.max(x, axis=1, keepdims=True)
    cat = jnp.concatenate([avg, mx], axis=1)
    out = jax.lax.conv_general_dilated(
        cat, conv_weight, window_strides=(1, 1),
        padding=[(P, P), (P, P)],
        dimension_numbers=("NCHW", "OIHW", "NCHW"),
    )
    return jax.nn.sigmoid(out)


if __name__ == "__main__":
    key = jax.random.PRNGKey(0)
    key_x, key_w = jax.random.split(key)

    N, C, H, W = 2, 4, 16, 16
    kernel_size = 7

    x = jax.random.normal(key_x, (N, C, H, W), dtype=jnp.float32)

    # Kaiming normal init with a=1 (as in the PyTorch module):
    # gain = sqrt(2 / (1 + a^2)) = 1, fan_in = 2*K*K, std = gain / sqrt(fan_in)
    fan_in = 2 * kernel_size * kernel_size
    std = 1.0 / jnp.sqrt(jnp.float32(fan_in))
    conv_weight = std * jax.random.normal(
        key_w, (1, 2, kernel_size, kernel_size), dtype=jnp.float32
    )

    fn = jax.jit(spatial_attention)
    out = jax.block_until_ready(fn(x, conv_weight))

    ref = _reference(x, conv_weight)
    assert out.shape == (N, 1, H, W)
    err = jnp.max(jnp.abs(out - ref))
    assert jnp.allclose(out, ref, atol=1e-5, rtol=1e-5), f"max abs err {err}"

    print("KERNEL_OK")
</pallas_src>

<mosaic_0001>
module attributes {stable_mosaic.version = 11 : i64} {
  func.func @_spatial_attention_kernel(%arg0: i32, %arg1: i32, %arg2: memref<98x256xf32, #tpu.memory_space<vmem>>, %arg3: memref<2x4x256xf32, #tpu.memory_space<vmem>>, %arg4: memref<2x256xf32, #tpu.memory_space<vmem>>, %arg5: memref<2x256xf32, #tpu.memory_space<vmem>>, %arg6: memref<2x256xf32, #tpu.memory_space<vmem>>) attributes {dimension_semantics = [#tpu.dimension_semantics<parallel>, #tpu.dimension_semantics<arbitrary>], iteration_bounds = array<i64: 1, 1>, scalar_prefetch = 0 : i64, scratch_operands = 2 : i64, tpu.core_type = #tpu.core_type<tc>, window_params = [{pipeline_mode = #tpu.pipeline_mode<synchronous>, transform_indices = @transform_0, window_bounds = array<i64: 98, 256>}, {transform_indices = @transform_1, window_bounds = array<i64: 2, 4, 256>}, {transform_indices = @transform_2, window_bounds = array<i64: 2, 256>}]} {
    %c0_i32 = arith.constant 0 : i32
    %0 = arith.cmpi eq, %arg1, %c0_i32 : i32
    %1 = arith.extui %0 : i1 to i32
    %c0_i32_0 = arith.constant 0 : i32
    %2 = arith.cmpi ne, %1, %c0_i32_0 : i32
    scf.if %2 {
      %cst_14 = arith.constant 0.000000e+00 : f32
      %15 = vector.broadcast %cst_14 : f32 to vector<2x256xf32>
      %c0_15 = arith.constant 0 : index
      %c0_16 = arith.constant 0 : index
      %16 = vector.load %arg5[%c0_15, %c0_16] : memref<2x256xf32, #tpu.memory_space<vmem>>, vector<2x256xf32>
      tpu.vector_store %arg5[%c0_15, %c0_16], %15 {strides = array<i32>} : memref<2x256xf32, #tpu.memory_space<vmem>>, vector<2x256xf32>,
      %cst_17 = arith.constant 0xFF800000 : f32
      %17 = vector.broadcast %cst_17 : f32 to vector<2x256xf32>
      %c0_18 = arith.constant 0 : index
      %c0_19 = arith.constant 0 : index
      %18 = vector.load %arg6[%c0_18, %c0_19] : memref<2x256xf32, #tpu.memory_space<vmem>>, vector<2x256xf32>
      tpu.vector_store %arg6[%c0_18, %c0_19], %17 {strides = array<i32>} : memref<2x256xf32, #tpu.memory_space<vmem>>, vector<2x256xf32>,
    } else {
    }
    %c0 = arith.constant 0 : index
    %c0_1 = arith.constant 0 : index
    %c0_2 = arith.constant 0 : index
    %3 = vector.load %arg3[%c0, %c0_1, %c0_2] : memref<2x4x256xf32, #tpu.memory_space<vmem>>, vector<2x4x256xf32>
    %c0_3 = arith.constant 0 : index
    %c0_4 = arith.constant 0 : index
    %4 = vector.load %arg5[%c0_3, %c0_4] : memref<2x256xf32, #tpu.memory_space<vmem>>, vector<2x256xf32>
    %cst = arith.constant dense<0.000000e+00> : vector<2x256xf32>
    %5 = vector.multi_reduction <add>, %3, %cst [1] : vector<2x4x256xf32> to vector<2x256xf32>
    %6 = arith.addf %4, %5 : vector<2x256xf32>
    %c0_5 = arith.constant 0 : index
    %c0_6 = arith.constant 0 : index
    %7 = vector.load %arg5[%c0_5, %c0_6] : memref<2x256xf32, #tpu.memory_space<vmem>>, vector<2x256xf32>
    tpu.vector_store %arg5[%c0_5, %c0_6], %6 {strides = array<i32>} : memref<2x256xf32, #tpu.memory_space<vmem>>, vector<2x256xf32>,
    %c0_7 = arith.constant 0 : index
    %c0_8 = arith.constant 0 : index
    %8 = vector.load %arg6[%c0_7, %c0_8] : memref<2x256xf32, #tpu.memory_space<vmem>>, vector<2x256xf32>
    %cst_9 = arith.constant dense<0xFF800000> : vector<2x256xf32>
    %9 = vector.multi_reduction <maximumf>, %3, %cst_9 [1] : vector<2x4x256xf32> to vector<2x256xf32>
    %10 = arith.maximumf %8, %9 : vector<2x256xf32>
    %c0_10 = arith.constant 0 : index
    %c0_11 = arith.constant 0 : index
    %11 = vector.load %arg6[%c0_10, %c0_11] : memref<2x256xf32, #tpu.memory_space<vmem>>, vector<2x256xf32>
    tpu.vector_store %arg6[%c0_10, %c0_11], %10 {strides = array<i32>} : memref<2x256xf32, #tpu.memory_space<vmem>>, vector<2x256xf32>,
    %c0_i32_12 = arith.constant 0 : i32
    %12 = arith.cmpi eq, %arg1, %c0_i32_12 : i32
    %13 = arith.extui %12 : i1 to i32
    %c0_i32_13 = arith.constant 0 : i32
    %14 = arith.cmpi ne, %13, %c0_i32_13 : i32
    scf.if %14 {
      %c0_14 = arith.constant 0 : index
      %c0_15 = arith.constant 0 : index
      %15 = vector.load %arg5[%c0_14, %c0_15] : memref<2x256xf32, #tpu.memory_space<vmem>>, vector<2x256xf32>
      %c0_16 = arith.constant 0 : index
      %c0_17 = arith.constant 0 : index
      %16 = vector.load %arg6[%c0_16, %c0_17] : memref<2x256xf32, #tpu.memory_space<vmem>>, vector<2x256xf32>
      %c51_i32 = arith.constant 51 : i32
      %17 = tpu.dynamic_rotate %15 by %c51_i32 dim 1 : vector<2x256xf32>, i32 -> vector<2x256xf32>
      %c0_18 = arith.constant 0 : index
      %c0_19 = arith.constant 0 : index
      %18 = vector.load %arg2[%c0_18, %c0_19] : memref<98x256xf32, #tpu.memory_space<vmem>>, vector<1x256xf32>
      %19 = vector.broadcast %18 : vector<1x256xf32> to vector<2x256xf32>
      %20 = arith.mulf %17, %19 : vector<2x256xf32>
      %c50_i32 = arith.constant 50 : i32
      %21 = tpu.dynamic_rotate %15 by %c50_i32 dim 1 : vector<2x256xf32>, i32 -> vector<2x256xf32>
      %c1 = arith.constant 1 : index
      %c0_20 = arith.constant 0 : index
      %22 = vector.load %arg2[%c1, %c0_20] : memref<98x256xf32, #tpu.memory_space<vmem>>, vector<1x256xf32>
      %23 = vector.broadcast %22 : vector<1x256xf32> to vector<2x256xf32>
      %24 = arith.mulf %21, %23 : vector<2x256xf32>
      %25 = arith.addf %20, %24 : vector<2x256xf32>
      %c49_i32 = arith.constant 49 : i32
      %26 = tpu.dynamic_rotate %15 by %c49_i32 dim 1 : vector<2x256xf32>, i32 -> vector<2x256xf32>
      %c2 = arith.constant 2 : index
      %c0_21 = arith.constant 0 : index
      %27 = vector.load %arg2[%c2, %c0_21] : memref<98x256xf32, #tpu.memory_space<vmem>>, vector<1x256xf32>
      %28 = vector.broadcast %27 : vector<1x256xf32> to vector<2x256xf32>
      %29 = arith.mulf %26, %28 : vector<2x256xf32>
      %30 = arith.addf %25, %29 : vector<2x256xf32>
      %c48_i32 = arith.constant 48 : i32
      %31 = tpu.dynamic_rotate %15 by %c48_i32 dim 1 : vector<2x256xf32>, i32 -> vector<2x256xf32>
      %c3 = arith.constant 3 : index
      %c0_22 = arith.constant 0 : index
      %32 = vector.load %arg2[%c3, %c0_22] : memref<98x256xf32, #tpu.memory_space<vmem>>, vector<1x256xf32>
      %33 = vector.broadcast %32 : vector<1x256xf32> to vector<2x256xf32>
      %34 = arith.mulf %31, %33 : vector<2x256xf32>
      %35 = arith.addf %30, %34 : vector<2x256xf32>
      %c47_i32 = arith.constant 47 : i32
      %36 = tpu.dynamic_rotate %15 by %c47_i32 dim 1 : vector<2x256xf32>, i32 -> vector<2x256xf32>
      %c4 = arith.constant 4 : index
      %c0_23 = arith.constant 0 : index
      %37 = vector.load %arg2[%c4, %c0_23] : memref<98x256xf32, #tpu.memory_space<vmem>>, vector<1x256xf32>
      %38 = vector.broadcast %37 : vector<1x256xf32> to vector<2x256xf32>
      %39 = arith.mulf %36, %38 : vector<2x256xf32>
      %40 = arith.addf %35, %39 : vector<2x256xf32>
      %c46_i32 = arith.constant 46 : i32
      %41 = tpu.dynamic_rotate %15 by %c46_i32 dim 1 : vector<2x256xf32>, i32 -> vector<2x256xf32>
      %c5 = arith.constant 5 : index
      %c0_24 = arith.constant 0 : index
      %42 = vector.load %arg2[%c5, %c0_24] : memref<98x256xf32, #tpu.memory_space<vmem>>, vector<1x256xf32>
      %43 = vector.broadcast %42 : vector<1x256xf32> to vector<2x256xf32>
      %44 = arith.mulf %41, %43 : vector<2x256xf32>
      %45 = arith.addf %40, %44 : vector<2x256xf32>
      %c45_i32 = arith.constant 45 : i32
      %46 = tpu.dynamic_rotate %15 by %c45_i32 dim 1 : vector<2x256xf32>, i32 -> vector<2x256xf32>
      %c6 = arith.constant 6 : index
      %c0_25 = arith.constant 0 : index
      %47 = vector.load %arg2[%c6, %c0_25] : memref<98x256xf32, #tpu.memory_space<vmem>>, vector<1x256xf32>
      %48 = vector.broadcast %47 : vector<1x256xf32> to vector<2x256xf32>
      %49 = arith.mulf %46, %48 : vector<2x256xf32>
      %50 = arith.addf %45, %49 : vector<2x256xf32>
      %c35_i32 = arith.constant 35 : i32
      %51 = tpu.dynamic_rotate %15 by %c35_i32 dim 1 : vector<2x256xf32>, i32 -> vector<2x256xf32>
      %c7 = arith.constant 7 : index
      %c0_26 = arith.constant 0 : index
      %52 = vector.load %arg2[%c7, %c0_26] : memref<98x256xf32, #tpu.memory_space<vmem>>, vector<1x256xf32>
      %53 = vector.broadcast %52 : vector<1x256xf32> to vector<2x256xf32>
      %54 = arith.mulf %51, %53 : vector<2x256xf32>
      %55 = arith.addf %50, %54 : vector<2x256xf32>
      %c34_i32 = arith.constant 34 : i32
      %56 = tpu.dynamic_rotate %15 by %c34_i32 dim 1 : vector<2x256xf32>, i32 -> vector<2x256xf32>
      %c8 = arith.constant 8 : index
      %c0_27 = arith.constant 0 : index
      %57 = vector.load %arg2[%c8, %c0_27] : memref<98x256xf32, #tpu.memory_space<vmem>>, vector<1x256xf32>
      %58 = vector.broadcast %57 : vector<1x256xf32> to vector<2x256xf32>
      %59 = arith.mulf %56, %58 : vector<2x256xf32>
      %60 = arith.addf %55, %59 : vector<2x256xf32>
      %c33_i32 = arith.constant 33 : i32
      %61 = tpu.dynamic_rotate %15 by %c33_i32 dim 1 : vector<2x256xf32>, i32 -> vector<2x256xf32>
      %c9 = arith.constant 9 : index
      %c0_28 = arith.constant 0 : index
      %62 = vector.load %arg2[%c9, %c0_28] : memref<98x256xf32, #tpu.memory_space<vmem>>, vector<1x256xf32>
      %63 = vector.broadcast %62 : vector<1x256xf32> to vector<2x256xf32>
      %64 = arith.mulf %61, %63 : vector<2x256xf32>
      %65 = arith.addf %60, %64 : vector<2x256xf32>
      %c32_i32 = arith.constant 32 : i32
      %66 = tpu.dynamic_rotate %15 by %c32_i32 dim 1 : vector<2x256xf32>, i32 -> vector<2x256xf32>
      %c10 = arith.constant 10 : index
      %c0_29 = arith.constant 0 : index
      %67 = vector.load %arg2[%c10, %c0_29] : memref<98x256xf32, #tpu.memory_space<vmem>>, vector<1x256xf32>
      %68 = vector.broadcast %67 : vector<1x256xf32> to vector<2x256xf32>
      %69 = arith.mulf %66, %68 : vector<2x256xf32>
      %70 = arith.addf %65, %69 : vector<2x256xf32>
      %c31_i32 = arith.constant 31 : i32
      %71 = tpu.dynamic_rotate %15 by %c31_i32 dim 1 : vector<2x256xf32>, i32 -> vector<2x256xf32>
      %c11 = arith.constant 11 : index
      %c0_30 = arith.constant 0 : index
      %72 = vector.load %arg2[%c11, %c0_30] : memref<98x256xf32, #tpu.memory_space<vmem>>, vector<1x256xf32>
      %73 = vector.broadcast %72 : vector<1x256xf32> to vector<2x256xf32>
      %74 = arith.mulf %71, %73 : vector<2x256xf32>
      %75 = arith.addf %70, %74 : vector<2x256xf32>
      %c30_i32 = arith.constant 30 : i32
      %76 = tpu.dynamic_rotate %15 by %c30_i32 dim 1 : vector<2x256xf32>, i32 -> vector<2x256xf32>
      %c12 = arith.constant 12 : index
      %c0_31 = arith.constant 0 : index
      %77 = vector.load %arg2[%c12, %c0_31] : memref<98x256xf32, #tpu.memory_space<vmem>>, vector<1x256xf32>
      %78 = vector.broadcast %77 : vector<1x256xf32> to vector<2x256xf32>
      %79 = arith.mulf %76, %78 : vector<2x256xf32>
      %80 = arith.addf %75, %79 : vector<2x256xf32>
      %c29_i32 = arith.constant 29 : i32
      %81 = tpu.dynamic_rotate %15 by %c29_i32 dim 1 : vector<2x256xf32>, i32 -> vector<2x256xf32>
      %c13 = arith.constant 13 : index
      %c0_32 = arith.constant 0 : index
      %82 = vector.load %arg2[%c13, %c0_32] : memref<98x256xf32, #tpu.memory_space<vmem>>, vector<1x256xf32>
      %83 = vector.broadcast %82 : vector<1x256xf32> to vector<2x256xf32>
      %84 = arith.mulf %81, %83 : vector<2x256xf32>
      %85 = arith.addf %80, %84 : vector<2x256xf32>
      %c19_i32 = arith.constant 19 : i32
      %86 = tpu.dynamic_rotate %15 by %c19_i32 dim 1 : vector<2x256xf32>, i32 -> vector<2x256xf32>
      %c14 = arith.constant 14 : index
      %c0_33 = arith.constant 0 : index
      %87 = vector.load %arg2[%c14, %c0_33] : memref<98x256xf32, #tpu.memory_space<vmem>>, vector<1x256xf32>
      %88 = vector.broadcast %87 : vector<1x256xf32> to vector<2x256xf32>
      %89 = arith.mulf %86, %88 : vector<2x256xf32>
      %90 = arith.addf %85, %89 : vector<2x256xf32>
      %c18_i32 = arith.constant 18 : i32
      %91 = tpu.dynamic_rotate %15 by %c18_i32 dim 1 : vector<2x256xf32>, i32 -> vector<2x256xf32>
      %c15 = arith.constant 15 : index
      %c0_34 = arith.constant 0 : index
      %92 = vector.load %arg2[%c15, %c0_34] : memref<98x256xf32, #tpu.memory_space<vmem>>, vector<1x256xf32>
      %93 = vector.broadcast %92 : vector<1x256xf32> to vector<2x256xf32>
      %94 = arith.mulf %91, %93 : vector<2x256xf32>
      %95 = arith.addf %90, %94 : vector<2x256xf32>
      %c17_i32 = arith.constant 17 : i32
      %96 = tpu.dynamic_rotate %15 by %c17_i32 dim 1 : vector<2x256xf32>, i32 -> vector<2x256xf32>
      %c16 = arith.constant 16 : index
      %c0_35 = arith.constant 0 : index
      %97 = vector.load %arg2[%c16, %c0_35] : memref<98x256xf32, #tpu.memory_space<vmem>>, vector<1x256xf32>
      %98 = vector.broadcast %97 : vector<1x256xf32> to vector<2x256xf32>
      %99 = arith.mulf %96, %98 : vector<2x256xf32>
      %100 = arith.addf %95, %99 : vector<2x256xf32>
      %c16_i32 = arith.constant 16 : i32
      %101 = tpu.dynamic_rotate %15 by %c16_i32 dim 1 : vector<2x256xf32>, i32 -> vector<2x256xf32>
      %c17 = arith.constant 17 : index
      %c0_36 = arith.constant 0 : index
      %102 = vector.load %arg2[%c17, %c0_36] : memref<98x256xf32, #tpu.memory_space<vmem>>, vector<1x256xf32>
      %103 = vector.broadcast %102 : vector<1x256xf32> to vector<2x256xf32>
      %104 = arith.mulf %101, %103 : vector<2x256xf32>
      %105 = arith.addf %100, %104 : vector<2x256xf32>
      %c15_i32 = arith.constant 15 : i32
      %106 = tpu.dynamic_rotate %15 by %c15_i32 dim 1 : vector<2x256xf32>, i32 -> vector<2x256xf32>
      %c18 = arith.constant 18 : index
      %c0_37 = arith.constant 0 : index
      %107 = vector.load %arg2[%c18, %c0_37] : memref<98x256xf32, #tpu.memory_space<vmem>>, vector<1x256xf32>
      %108 = vector.broadcast %107 : vector<1x256xf32> to vector<2x256xf32>
      %109 = arith.mulf %106, %108 : vector<2x256xf32>
      %110 = arith.addf %105, %109 : vector<2x256xf32>
      %c14_i32 = arith.constant 14 : i32
      %111 = tpu.dynamic_rotate %15 by %c14_i32 dim 1 : vector<2x256xf32>, i32 -> vector<2x256xf32>
      %c19 = arith.constant 19 : index
      %c0_38 = arith.constant 0 : index
      %112 = vector.load %arg2[%c19, %c0_38] : memref<98x256xf32, #tpu.memory_space<vmem>>, vector<1x256xf32>
      %113 = vector.broadcast %112 : vector<1x256xf32> to vector<2x256xf32>
      %114 = arith.mulf %111, %113 : vector<2x256xf32>
      %115 = arith.addf %110, %114 : vector<2x256xf32>
      %c13_i32 = arith.constant 13 : i32
      %116 = tpu.dynamic_rotate %15 by %c13_i32 dim 1 : vector<2x256xf32>, i32 -> vector<2x256xf32>
      %c20 = arith.constant 20 : index
      %c0_39 = arith.constant 0 : index
      %117 = vector.load %arg2[%c20, %c0_39] : memref<98x256xf32, #tpu.memory_space<vmem>>, vector<1x256xf32>
      %118 = vector.broadcast %117 : vector<1x256xf32> to vector<2x256xf32>
      %119 = arith.mulf %116, %118 : vector<2x256xf32>
      %120 = arith.addf %115, %119 : vector<2x256xf32>
      %c3_i32 = arith.constant 3 : i32
      %121 = tpu.dynamic_rotate %15 by %c3_i32 dim 1 : vector<2x256xf32>, i32 -> vector<2x256xf32>
      %c21 = arith.constant 21 : index
      %c0_40 = arith.constant 0 : index
      %122 = vector.load %arg2[%c21, %c0_40] : memref<98x256xf32, #tpu.memory_space<vmem>>, vector<1x256xf32>
      %123 = vector.broadcast %122 : vector<1x256xf32> to vector<2x256xf32>
      %124 = arith.mulf %121, %123 : vector<2x256xf32>
      %125 = arith.addf %120, %124 : vector<2x256xf32>
      %c2_i32 = arith.constant 2 : i32
      %126 = tpu.dynamic_rotate %15 by %c2_i32 dim 1 : vector<2x256xf32>, i32 -> vector<2x256xf32>
      %c22 = arith.constant 22 : index
      %c0_41 = arith.constant 0 : index
      %127 = vector.load %arg2[%c22, %c0_41] : memref<98x256xf32, #tpu.memory_space<vmem>>, vector<1x256xf32>
      %128 = vector.broadcast %127 : vector<1x256xf32> to vector<2x256xf32>
      %129 = arith.mulf %126, %128 : vector<2x256xf32>
      %130 = arith.addf %125, %129 : vector<2x256xf32>
      %c1_i32 = arith.constant 1 : i32
      %131 = tpu.dynamic_rotate %15 by %c1_i32 dim 1 : vector<2x256xf32>, i32 -> vector<2x256xf32>
      %c23 = arith.constant 23 : index
      %c0_42 = arith.constant 0 : index
      %132 = vector.load %arg2[%c23, %c0_42] : memref<98x256xf32, #tpu.memory_space<vmem>>, vector<1x256xf32>
      %133 = vector.broadcast %132 : vector<1x256xf32> to vector<2x256xf32>
      %134 = arith.mulf %131, %133 : vector<2x256xf32>
      %135 = arith.addf %130, %134 : vector<2x256xf32>
      %c24 = arith.constant 24 : index
      %c0_43 = arith.constant 0 : index
      %136 = vector.load %arg2[%c24, %c0_43] : memref<98x256xf32, #tpu.memory_space<vmem>>, vector<1x256xf32>
      %137 = vector.broadcast %136 : vector<1x256xf32> to vector<2x256xf32>
      %138 = arith.mulf %15, %137 : vector<2x256xf32>
      %139 = arith.addf %135, %138 : vector<2x256xf32>
      %c255_i32 = arith.constant 255 : i32
      %140 = tpu.dynamic_rotate %15 by %c255_i32 dim 1 : vector<2x256xf32>, i32 -> vector<2x256xf32>
      %c25 = arith.constant 25 : index
      %c0_44 = arith.constant 0 : index
      %141 = vector.load %arg2[%c25, %c0_44] : memref<98x256xf32, #tpu.memory_space<vmem>>, vector<1x256xf32>
      %142 = vector.broadcast %141 : vector<1x256xf32> to vector<2x256xf32>
      %143 = arith.mulf %140, %142 : vector<2x256xf32>
      %144 = arith.addf %139, %143 : vector<2x256xf32>
      %c254_i32 = arith.constant 254 : i32
      %145 = tpu.dynamic_rotate %15 by %c254_i32 dim 1 : vector<2x256xf32>, i32 -> vector<2x256xf32>
      %c26 = arith.constant 26 : index
      %c0_45 = arith.constant 0 : index
      %146 = vector.load %arg2[%c26, %c0_45] : memref<98x256xf32, #tpu.memory_space<vmem>>, vector<1x256xf32>
      %147 = vector.broadcast %146 : vector<1x256xf32> to vector<2x256xf32>
      %148 = arith.mulf %145, %147 : vector<2x256xf32>
      %149 = arith.addf %144, %148 : vector<2x256xf32>
      %c253_i32 = arith.constant 253 : i32
      %150 = tpu.dynamic_rotate %15 by %c253_i32 dim 1 : vector<2x256xf32>, i32 -> vector<2x256xf32>
      %c27 = arith.constant 27 : index
      %c0_46 = arith.constant 0 : index
      %151 = vector.load %arg2[%c27, %c0_46] : memref<98x256xf32, #tpu.memory_space<vmem>>, vector<1x256xf32>
      %152 = vector.broadcast %151 : vector<1x256xf32> to vector<2x256xf32>
      %153 = arith.mulf %150, %152 : vector<2x256xf32>
      %154 = arith.addf %149, %153 : vector<2x256xf32>
      %c243_i32 = arith.constant 243 : i32
      %155 = tpu.dynamic_rotate %15 by %c243_i32 dim 1 : vector<2x256xf32>, i32 -> vector<2x256xf32>
      %c28 = arith.constant 28 : index
      %c0_47 = arith.constant 0 : index
      %156 = vector.load %arg2[%c28, %c0_47] : memref<98x256xf32, #tpu.memory_space<vmem>>, vector<1x256xf32>
      %157 = vector.broadcast %156 : vector<1x256xf32> to vector<2x256xf32>
      %158 = arith.mulf %155, %157 : vector<2x256xf32>
      %159 = arith.addf %154, %158 : vector<2x256xf32>
      %c242_i32 = arith.constant 242 : i32
      %160 = tpu.dynamic_rotate %15 by %c242_i32 dim 1 : vector<2x256xf32>, i32 -> vector<2x256xf32>
      %c29 = arith.constant 29 : index
      %c0_48 = arith.constant 0 : index
      %161 = vector.load %arg2[%c29, %c0_48] : memref<98x256xf32, #tpu.memory_space<vmem>>, vector<1x256xf32>
      %162 = vector.broadcast %161 : vector<1x256xf32> to vector<2x256xf32>
      %163 = arith.mulf %160, %162 : vector<2x256xf32>
      %164 = arith.addf %159, %163 : vector<2x256xf32>
      %c241_i32 = arith.constant 241 : i32
      %165 = tpu.dynamic_rotate %15 by %c241_i32 dim 1 : vector<2x256xf32>, i32 -> vector<2x256xf32>
      %c30 = arith.constant 30 : index
      %c0_49 = arith.constant 0 : index
      %166 = vector.load %arg2[%c30, %c0_49] : memref<98x256xf32, #tpu.memory_space<vmem>>, vector<1x256xf32>
      %167 = vector.broadcast %166 : vector<1x256xf32> to vector<2x256xf32>
      %168 = arith.mulf %165, %167 : vector<2x256xf32>
      %169 = arith.addf %164, %168 : vector<2x256xf32>
      %c240_i32 = arith.constant 240 : i32
      %170 = tpu.dynamic_rotate %15 by %c240_i32 dim 1 : vector<2x256xf32>, i32 -> vector<2x256xf32>
      %c31 = arith.constant 31 : index
      %c0_50 = arith.constant 0 : index
      %171 = vector.load %arg2[%c31, %c0_50] : memref<98x256xf32, #tpu.memory_space<vmem>>, vector<1x256xf32>
      %172 = vector.broadcast %171 : vector<1x256xf32> to vector<2x256xf32>
      %173 = arith.mulf %170, %172 : vector<2x256xf32>
      %174 = arith.addf %169, %173 : vector<2x256xf32>
      %c239_i32 = arith.constant 239 : i32
      %175 = tpu.dynamic_rotate %15 by %c239_i32 dim 1 : vector<2x256xf32>, i32 -> vector<2x256xf32>
      %c32 = arith.constant 32 : index
      %c0_51 = arith.constant 0 : index
      %176 = vector.load %arg2[%c32, %c0_51] : memref<98x256xf32, #tpu.memory_space<vmem>>, vector<1x256xf32>
      %177 = vector.broadcast %176 : vector<1x256xf32> to vector<2x256xf32>
      %178 = arith.mulf %175, %177 : vector<2x256xf32>
      %179 = arith.addf %174, %178 : vector<2x256xf32>
      %c238_i32 = arith.constant 238 : i32
      %180 = tpu.dynamic_rotate %15 by %c238_i32 dim 1 : vector<2x256xf32>, i32 -> vector<2x256xf32>
      %c33 = arith.constant 33 : index
      %c0_52 = arith.constant 0 : index
      %181 = vector.load %arg2[%c33, %c0_52] : memref<98x256xf32, #tpu.memory_space<vmem>>, vector<1x256xf32>
      %182 = vector.broadcast %181 : vector<1x256xf32> to vector<2x256xf32>
      %183 = arith.mulf %180, %182 : vector<2x256xf32>
      %184 = arith.addf %179, %183 : vector<2x256xf32>
      %c237_i32 = arith.constant 237 : i32
      %185 = tpu.dynamic_rotate %15 by %c237_i32 dim 1 : vector<2x256xf32>, i32 -> vector<2x256xf32>
      %c34 = arith.constant 34 : index
      %c0_53 = arith.constant 0 : index
      %186 = vector.load %arg2[%c34, %c0_53] : memref<98x256xf32, #tpu.memory_space<vmem>>, vector<1x256xf32>
      %187 = vector.broadcast %186 : vector<1x256xf32> to vector<2x256xf32>
      %188 = arith.mulf %185, %187 : vector<2x256xf32>
      %189 = arith.addf %184, %188 : vector<2x256xf32>
      %c227_i32 = arith.constant 227 : i32
      %190 = tpu.dynamic_rotate %15 by %c227_i32 dim 1 : vector<2x256xf32>, i32 -> vector<2x256xf32>
      %c35 = arith.constant 35 : index
      %c0_54 = arith.constant 0 : index
      %191 = vector.load %arg2[%c35, %c0_54] : memref<98x256xf32, #tpu.memory_space<vmem>>, vector<1x256xf32>
      %192 = vector.broadcast %191 : vector<1x256xf32> to vector<2x256xf32>
      %193 = arith.mulf %190, %192 : vector<2x256xf32>
      %194 = arith.addf %189, %193 : vector<2x256xf32>
      %c226_i32 = arith.constant 226 : i32
      %195 = tpu.dynamic_rotate %15 by %c226_i32 dim 1 : vector<2x256xf32>, i32 -> vector<2x256xf32>
      %c36 = arith.constant 36 : index
      %c0_55 = arith.constant 0 : index
      %196 = vector.load %arg2[%c36, %c0_55] : memref<98x256xf32, #tpu.memory_space<vmem>>, vector<1x256xf32>
      %197 = vector.broadcast %196 : vector<1x256xf32> to vector<2x256xf32>
      %198 = arith.mulf %195, %197 : vector<2x256xf32>
      %199 = arith.addf %194, %198 : vector<2x256xf32>
      %c225_i32 = arith.constant 225 : i32
      %200 = tpu.dynamic_rotate %15 by %c225_i32 dim 1 : vector<2x256xf32>, i32 -> vector<2x256xf32>
      %c37 = arith.constant 37 : index
      %c0_56 = arith.constant 0 : index
      %201 = vector.load %arg2[%c37, %c0_56] : memref<98x256xf32, #tpu.memory_space<vmem>>, vector<1x256xf32>
      %202 = vector.broadcast %201 : vector<1x256xf32> to vector<2x256xf32>
      %203 = arith.mulf %200, %202 : vector<2x256xf32>
      %204 = arith.addf %199, %203 : vector<2x256xf32>
      %c224_i32 = arith.constant 224 : i32
      %205 = tpu.dynamic_rotate %15 by %c224_i32 dim 1 : vector<2x256xf32>, i32 -> vector<2x256xf32>
      %c38 = arith.constant 38 : index
      %c0_57 = arith.constant 0 : index
      %206 = vector.load %arg2[%c38, %c0_57] : memref<98x256xf32, #tpu.memory_space<vmem>>, vector<1x256xf32>
      %207 = vector.broadcast %206 : vector<1x256xf32> to vector<2x256xf32>
      %208 = arith.mulf %205, %207 : vector<2x256xf32>
      %209 = arith.addf %204, %208 : vector<2x256xf32>
      %c223_i32 = arith.constant 223 : i32
      %210 = tpu.dynamic_rotate %15 by %c223_i32 dim 1 : vector<2x256xf32>, i32 -> vector<2x256xf32>
      %c39 = arith.constant 39 : index
      %c0_58 = arith.constant 0 : index
      %211 = vector.load %arg2[%c39, %c0_58] : memref<98x256xf32, #tpu.memory_space<vmem>>, vector<1x256xf32>
      %212 = vector.broadcast %211 : vector<1x256xf32> to vector<2x256xf32>
      %213 = arith.mulf %210, %212 : vector<2x256xf32>
      %214 = arith.addf %209, %213 : vector<2x256xf32>
      %c222_i32 = arith.constant 222 : i32
      %215 = tpu.dynamic_rotate %15 by %c222_i32 dim 1 : vector<2x256xf32>, i32 -> vector<2x256xf32>
      %c40 = arith.constant 40 : index
      %c0_59 = arith.constant 0 : index
      %216 = vector.load %arg2[%c40, %c0_59] : memref<98x256xf32, #tpu.memory_space<vmem>>, vector<1x256xf32>
      %217 = vector.broadcast %216 : vector<1x256xf32> to vector<2x256xf32>
      %218 = arith.mulf %215, %217 : vector<2x256xf32>
      %219 = arith.addf %214, %218 : vector<2x256xf32>
      %c221_i32 = arith.constant 221 : i32
      %220 = tpu.dynamic_rotate %15 by %c221_i32 dim 1 : vector<2x256xf32>, i32 -> vector<2x256xf32>
      %c41 = arith.constant 41 : index
      %c0_60 = arith.constant 0 : index
      %221 = vector.load %arg2[%c41, %c0_60] : memref<98x256xf32, #tpu.memory_space<vmem>>, vector<1x256xf32>
      %222 = vector.broadcast %221 : vector<1x256xf32> to vector<2x256xf32>
      %223 = arith.mulf %220, %222 : vector<2x256xf32>
      %224 = arith.addf %219, %223 : vector<2x256xf32>
      %c211_i32 = arith.constant 211 : i32
      %225 = tpu.dynamic_rotate %15 by %c211_i32 dim 1 : vector<2x256xf32>, i32 -> vector<2x256xf32>
      %c42 = arith.constant 42 : index
      %c0_61 = arith.constant 0 : index
      %226 = vector.load %arg2[%c42, %c0_61] : memref<98x256xf32, #tpu.memory_space<vmem>>, vector<1x256xf32>
      %227 = vector.broadcast %226 : vector<1x256xf32> to vector<2x256xf32>
      %228 = arith.mulf %225, %227 : vector<2x256xf32>
      %229 = arith.addf %224, %228 : vector<2x256xf32>
      %c210_i32 = arith.constant 210 : i32
      %230 = tpu.dynamic_rotate %15 by %c210_i32 dim 1 : vector<2x256xf32>, i32 -> vector<2x256xf32>
      %c43 = arith.constant 43 : index
      %c0_62 = arith.constant 0 : index
      %231 = vector.load %arg2[%c43, %c0_62] : memref<98x256xf32, #tpu.memory_space<vmem>>, vector<1x256xf32>
      %232 = vector.broadcast %231 : vector<1x256xf32> to vector<2x256xf32>
      %233 = arith.mulf %230, %232 : vector<2x256xf32>
      %234 = arith.addf %229, %233 : vector<2x256xf32>
      %c209_i32 = arith.constant 209 : i32
      %235 = tpu.dynamic_rotate %15 by %c209_i32 dim 1 : vector<2x256xf32>, i32 -> vector<2x256xf32>
      %c44 = arith.constant 44 : index
      %c0_63 = arith.constant 0 : index
      %236 = vector.load %arg2[%c44, %c0_63] : memref<98x256xf32, #tpu.memory_space<vmem>>, vector<1x256xf32>
      %237 = vector.broadcast %236 : vector<1x256xf32> to vector<2x256xf32>
      %238 = arith.mulf %235, %237 : vector<2x256xf32>
      %239 = arith.addf %234, %238 : vector<2x256xf32>
      %c208_i32 = arith.constant 208 : i32
      %240 = tpu.dynamic_rotate %15 by %c208_i32 dim 1 : vector<2x256xf32>, i32 -> vector<2x256xf32>
      %c45 = arith.constant 45 : index
      %c0_64 = arith.constant 0 : index
      %241 = vector.load %arg2[%c45, %c0_64] : memref<98x256xf32, #tpu.memory_space<vmem>>, vector<1x256xf32>
      %242 = vector.broadcast %241 : vector<1x256xf32> to vector<2x256xf32>
      %243 = arith.mulf %240, %242 : vector<2x256xf32>
      %244 = arith.addf %239, %243 : vector<2x256xf32>
      %c207_i32 = arith.constant 207 : i32
      %245 = tpu.dynamic_rotate %15 by %c207_i32 dim 1 : vector<2x256xf32>, i32 -> vector<2x256xf32>
      %c46 = arith.constant 46 : index
      %c0_65 = arith.constant 0 : index
      %246 = vector.load %arg2[%c46, %c0_65] : memref<98x256xf32, #tpu.memory_space<vmem>>, vector<1x256xf32>
      %247 = vector.broadcast %246 : vector<1x256xf32> to vector<2x256xf32>
      %248 = arith.mulf %245, %247 : vector<2x256xf32>
      %249 = arith.addf %244, %248 : vector<2x256xf32>
      %c206_i32 = arith.constant 206 : i32
      %250 = tpu.dynamic_rotate %15 by %c206_i32 dim 1 : vector<2x256xf32>, i32 -> vector<2x256xf32>
      %c47 = arith.constant 47 : index
      %c0_66 = arith.constant 0 : index
      %251 = vector.load %arg2[%c47, %c0_66] : memref<98x256xf32, #tpu.memory_space<vmem>>, vector<1x256xf32>
      %252 = vector.broadcast %251 : vector<1x256xf32> to vector<2x256xf32>
      %253 = arith.mulf %250, %252 : vector<2x256xf32>
      %254 = arith.addf %249, %253 : vector<2x256xf32>
      %c205_i32 = arith.constant 205 : i32
      %255 = tpu.dynamic_rotate %15 by %c205_i32 dim 1 : vector<2x256xf32>, i32 -> vector<2x256xf32>
      %c48 = arith.constant 48 : index
      %c0_67 = arith.constant 0 : index
      %256 = vector.load %arg2[%c48, %c0_67] : memref<98x256xf32, #tpu.memory_space<vmem>>, vector<1x256xf32>
      %257 = vector.broadcast %256 : vector<1x256xf32> to vector<2x256xf32>
      %258 = arith.mulf %255, %257 : vector<2x256xf32>
      %259 = arith.addf %254, %258 : vector<2x256xf32>
      %c51_i32_68 = arith.constant 51 : i32
      %260 = tpu.dynamic_rotate %16 by %c51_i32_68 dim 1 : vector<2x256xf32>, i32 -> vector<2x256xf32>
      %c49 = arith.constant 49 : index
      %c0_69 = arith.constant 0 : index
      %261 = vector.load %arg2[%c49, %c0_69] : memref<98x256xf32, #tpu.memory_space<vmem>>, vector<1x256xf32>
      %262 = vector.broadcast %261 : vector<1x256xf32> to vector<2x256xf32>
      %263 = arith.mulf %260, %262 : vector<2x256xf32>
      %264 = arith.addf %259, %263 : vector<2x256xf32>
      %c50_i32_70 = arith.constant 50 : i32
      %265 = tpu.dynamic_rotate %16 by %c50_i32_70 dim 1 : vector<2x256xf32>, i32 -> vector<2x256xf32>
      %c50 = arith.constant 50 : index
      %c0_71 = arith.constant 0 : index
      %266 = vector.load %arg2[%c50, %c0_71] : memref<98x256xf32, #tpu.memory_space<vmem>>, vector<1x256xf32>
      %267 = vector.broadcast %266 : vector<1x256xf32> to vector<2x256xf32>
      %268 = arith.mulf %265, %267 : vector<2x256xf32>
      %269 = arith.addf %264, %268 : vector<2x256xf32>
      %c49_i32_72 = arith.constant 49 : i32
      %270 = tpu.dynamic_rotate %16 by %c49_i32_72 dim 1 : vector<2x256xf32>, i32 -> vector<2x256xf32>
      %c51 = arith.constant 51 : index
      %c0_73 = arith.constant 0 : index
      %271 = vector.load %arg2[%c51, %c0_73] : memref<98x256xf32, #tpu.memory_space<vmem>>, vector<1x256xf32>
      %272 = vector.broadcast %271 : vector<1x256xf32> to vector<2x256xf32>
      %273 = arith.mulf %270, %272 : vector<2x256xf32>
      %274 = arith.addf %269, %273 : vector<2x256xf32>
      %c48_i32_74 = arith.constant 48 : i32
      %275 = tpu.dynamic_rotate %16 by %c48_i32_74 dim 1 : vector<2x256xf32>, i32 -> vector<2x256xf32>
      %c52 = arith.constant 52 : index
      %c0_75 = arith.constant 0 : index
      %276 = vector.load %arg2[%c52, %c0_75] : memref<98x256xf32, #tpu.memory_space<vmem>>, vector<1x256xf32>
      %277 = vector.broadcast %276 : vector<1x256xf32> to vector<2x256xf32>
      %278 = arith.mulf %275, %277 : vector<2x256xf32>
      %279 = arith.addf %274, %278 : vector<2x256xf32>
      %c47_i32_76 = arith.constant 47 : i32
      %280 = tpu.dynamic_rotate %16 by %c47_i32_76 dim 1 : vector<2x256xf32>, i32 -> vector<2x256xf32>
      %c53 = arith.constant 53 : index
      %c0_77 = arith.constant 0 : index
      %281 = vector.load %arg2[%c53, %c0_77] : memref<98x256xf32, #tpu.memory_space<vmem>>, vector<1x256xf32>
      %282 = vector.broadcast %281 : vector<1x256xf32> to vector<2x256xf32>
      %283 = arith.mulf %280, %282 : vector<2x256xf32>
      %284 = arith.addf %279, %283 : vector<2x256xf32>
      %c46_i32_78 = arith.constant 46 : i32
      %285 = tpu.dynamic_rotate %16 by %c46_i32_78 dim 1 : vector<2x256xf32>, i32 -> vector<2x256xf32>
      %c54 = arith.constant 54 : index
      %c0_79 = arith.constant 0 : index
      %286 = vector.load %arg2[%c54, %c0_79] : memref<98x256xf32, #tpu.memory_space<vmem>>, vector<1x256xf32>
      %287 = vector.broadcast %286 : vector<1x256xf32> to vector<2x256xf32>
      %288 = arith.mulf %285, %287 : vector<2x256xf32>
      %289 = arith.addf %284, %288 : vector<2x256xf32>
      %c45_i32_80 = arith.constant 45 : i32
      %290 = tpu.dynamic_rotate %16 by %c45_i32_80 dim 1 : vector<2x256xf32>, i32 -> vector<2x256xf32>
      %c55 = arith.constant 55 : index
      %c0_81 = arith.constant 0 : index
      %291 = vector.load %arg2[%c55, %c0_81] : memref<98x256xf32, #tpu.memory_space<vmem>>, vector<1x256xf32>
      %292 = vector.broadcast %291 : vector<1x256xf32> to vector<2x256xf32>
      %293 = arith.mulf %290, %292 : vector<2x256xf32>
      %294 = arith.addf %289, %293 : vector<2x256xf32>
      %c35_i32_82 = arith.constant 35 : i32
      %295 = tpu.dynamic_rotate %16 by %c35_i32_82 dim 1 : vector<2x256xf32>, i32 -> vector<2x256xf32>
      %c56 = arith.constant 56 : index
      %c0_83 = arith.constant 0 : index
      %296 = vector.load %arg2[%c56, %c0_83] : memref<98x256xf32, #tpu.memory_space<vmem>>, vector<1x256xf32>
      %297 = vector.broadcast %296 : vector<1x256xf32> to vector<2x256xf32>
      %298 = arith.mulf %295, %297 : vector<2x256xf32>
      %299 = arith.addf %294, %298 : vector<2x256xf32>
      %c34_i32_84 = arith.constant 34 : i32
      %300 = tpu.dynamic_rotate %16 by %c34_i32_84 dim 1 : vector<2x256xf32>, i32 -> vector<2x256xf32>
      %c57 = arith.constant 57 : index
      %c0_85 = arith.constant 0 : index
      %301 = vector.load %arg2[%c57, %c0_85] : memref<98x256xf32, #tpu.memory_space<vmem>>, vector<1x256xf32>
      %302 = vector.broadcast %301 : vector<1x256xf32> to vector<2x256xf32>
      %303 = arith.mulf %300, %302 : vector<2x256xf32>
      %304 = arith.addf %299, %303 : vector<2x256xf32>
      %c33_i32_86 = arith.constant 33 : i32
      %305 = tpu.dynamic_rotate %16 by %c33_i32_86 dim 1 : vector<2x256xf32>, i32 -> vector<2x256xf32>
      %c58 = arith.constant 58 : index
      %c0_87 = arith.constant 0 : index
      %306 = vector.load %arg2[%c58, %c0_87] : memref<98x256xf32, #tpu.memory_space<vmem>>, vector<1x256xf32>
      %307 = vector.broadcast %306 : vector<1x256xf32> to vector<2x256xf32>
      %308 = arith.mulf %305, %307 : vector<2x256xf32>
      %309 = arith.addf %304, %308 : vector<2x256xf32>
      %c32_i32_88 = arith.constant 32 : i32
      %310 = tpu.dynamic_rotate %16 by %c32_i32_88 dim 1 : vector<2x256xf32>, i32 -> vector<2x256xf32>
      %c59 = arith.constant 59 : index
      %c0_89 = arith.constant 0 : index
      %311 = vector.load %arg2[%c59, %c0_89] : memref<98x256xf32, #tpu.memory_space<vmem>>, vector<1x256xf32>
      %312 = vector.broadcast %311 : vector<1x256xf32> to vector<2x256xf32>
      %313 = arith.mulf %310, %312 : vector<2x256xf32>
      %314 = arith.addf %309, %313 : vector<2x256xf32>
      %c31_i32_90 = arith.constant 31 : i32
      %315 = tpu.dynamic_rotate %16 by %c31_i32_90 dim 1 : vector<2x256xf32>, i32 -> vector<2x256xf32>
      %c60 = arith.constant 60 : index
      %c0_91 = arith.constant 0 : index
      %316 = vector.load %arg2[%c60, %c0_91] : memref<98x256xf32, #tpu.memory_space<vmem>>, vector<1x256xf32>
      %317 = vector.broadcast %316 : vector<1x256xf32> to vector<2x256xf32>
      %318 = arith.mulf %315, %317 : vector<2x256xf32>
      %319 = arith.addf %314, %318 : vector<2x256xf32>
      %c30_i32_92 = arith.constant 30 : i32
      %320 = tpu.dynamic_rotate %16 by %c30_i32_92 dim 1 : vector<2x256xf32>, i32 -> vector<2x256xf32>
      %c61 = arith.constant 61 : index
      %c0_93 = arith.constant 0 : index
      %321 = vector.load %arg2[%c61, %c0_93] : memref<98x256xf32, #tpu.memory_space<vmem>>, vector<1x256xf32>
      %322 = vector.broadcast %321 : vector<1x256xf32> to vector<2x256xf32>
      %323 = arith.mulf %320, %322 : vector<2x256xf32>
      %324 = arith.addf %319, %323 : vector<2x256xf32>
      %c29_i32_94 = arith.constant 29 : i32
      %325 = tpu.dynamic_rotate %16 by %c29_i32_94 dim 1 : vector<2x256xf32>, i32 -> vector<2x256xf32>
      %c62 = arith.constant 62 : index
      %c0_95 = arith.constant 0 : index
      %326 = vector.load %arg2[%c62, %c0_95] : memref<98x256xf32, #tpu.memory_space<vmem>>, vector<1x256xf32>
      %327 = vector.broadcast %326 : vector<1x256xf32> to vector<2x256xf32>
      %328 = arith.mulf %325, %327 : vector<2x256xf32>
      %329 = arith.addf %324, %328 : vector<2x256xf32>
      %c19_i32_96 = arith.constant 19 : i32
      %330 = tpu.dynamic_rotate %16 by %c19_i32_96 dim 1 : vector<2x256xf32>, i32 -> vector<2x256xf32>
      %c63 = arith.constant 63 : index
      %c0_97 = arith.constant 0 : index
      %331 = vector.load %arg2[%c63, %c0_97] : memref<98x256xf32, #tpu.memory_space<vmem>>, vector<1x256xf32>
      %332 = vector.broadcast %331 : vector<1x256xf32> to vector<2x256xf32>
      %333 = arith.mulf %330, %332 : vector<2x256xf32>
      %334 = arith.addf %329, %333 : vector<2x256xf32>
      %c18_i32_98 = arith.constant 18 : i32
      %335 = tpu.dynamic_rotate %16 by %c18_i32_98 dim 1 : vector<2x256xf32>, i32 -> vector<2x256xf32>
      %c64 = arith.constant 64 : index
      %c0_99 = arith.constant 0 : index
      %336 = vector.load %arg2[%c64, %c0_99] : memref<98x256xf32, #tpu.memory_space<vmem>>, vector<1x256xf32>
      %337 = vector.broadcast %336 : vector<1x256xf32> to vector<2x256xf32>
      %338 = arith.mulf %335, %337 : vector<2x256xf32>
      %339 = arith.addf %334, %338 : vector<2x256xf32>
      %c17_i32_100 = arith.constant 17 : i32
      %340 = tpu.dynamic_rotate %16 by %c17_i32_100 dim 1 : vector<2x256xf32>, i32 -> vector<2x256xf32>
      %c65 = arith.constant 65 : index
      %c0_101 = arith.constant 0 : index
      %341 = vector.load %arg2[%c65, %c0_101] : memref<98x256xf32, #tpu.memory_space<vmem>>, vector<1x256xf32>
      %342 = vector.broadcast %341 : vector<1x256xf32> to vector<2x256xf32>
      %343 = arith.mulf %340, %342 : vector<2x256xf32>
      %344 = arith.addf %339, %343 : vector<2x256xf32>
      %c16_i32_102 = arith.constant 16 : i32
      %345 = tpu.dynamic_rotate %16 by %c16_i32_102 dim 1 : vector<2x256xf32>, i32 -> vector<2x256xf32>
      %c66 = arith.constant 66 : index
      %c0_103 = arith.constant 0 : index
      %346 = vector.load %arg2[%c66, %c0_103] : memref<98x256xf32, #tpu.memory_space<vmem>>, vector<1x256xf32>
      %347 = vector.broadcast %346 : vector<1x256xf32> to vector<2x256xf32>
      %348 = arith.mulf %345, %347 : vector<2x256xf32>
      %349 = arith.addf %344, %348 : vector<2x256xf32>
      %c15_i32_104 = arith.constant 15 : i32
      %350 = tpu.dynamic_rotate %16 by %c15_i32_104 dim 1 : vector<2x256xf32>, i32 -> vector<2x256xf32>
      %c67 = arith.constant 67 : index
      %c0_105 = arith.constant 0 : index
      %351 = vector.load %arg2[%c67, %c0_105] : memref<98x256xf32, #tpu.memory_space<vmem>>, vector<1x256xf32>
      %352 = vector.broadcast %351 : vector<1x256xf32> to vector<2x256xf32>
      %353 = arith.mulf %350, %352 : vector<2x256xf32>
      %354 = arith.addf %349, %353 : vector<2x256xf32>
      %c14_i32_106 = arith.constant 14 : i32
      %355 = tpu.dynamic_rotate %16 by %c14_i32_106 dim 1 : vector<2x256xf32>, i32 -> vector<2x256xf32>
      %c68 = arith.constant 68 : index
      %c0_107 = arith.constant 0 : index
      %356 = vector.load %arg2[%c68, %c0_107] : memref<98x256xf32, #tpu.memory_space<vmem>>, vector<1x256xf32>
      %357 = vector.broadcast %356 : vector<1x256xf32> to vector<2x256xf32>
      %358 = arith.mulf %355, %357 : vector<2x256xf32>
      %359 = arith.addf %354, %358 : vector<2x256xf32>
      %c13_i32_108 = arith.constant 13 : i32
      %360 = tpu.dynamic_rotate %16 by %c13_i32_108 dim 1 : vector<2x256xf32>, i32 -> vector<2x256xf32>
      %c69 = arith.constant 69 : index
      %c0_109 = arith.constant 0 : index
      %361 = vector.load %arg2[%c69, %c0_109] : memref<98x256xf32, #tpu.memory_space<vmem>>, vector<1x256xf32>
      %362 = vector.broadcast %361 : vector<1x256xf32> to vector<2x256xf32>
      %363 = arith.mulf %360, %362 : vector<2x256xf32>
      %364 = arith.addf %359, %363 : vector<2x256xf32>
      %c3_i32_110 = arith.constant 3 : i32
      %365 = tpu.dynamic_rotate %16 by %c3_i32_110 dim 1 : vector<2x256xf32>, i32 -> vector<2x256xf32>
      %c70 = arith.constant 70 : index
      %c0_111 = arith.constant 0 : index
      %366 = vector.load %arg2[%c70, %c0_111] : memref<98x256xf32, #tpu.memory_space<vmem>>, vector<1x256xf32>
      %367 = vector.broadcast %366 : vector<1x256xf32> to vector<2x256xf32>
      %368 = arith.mulf %365, %367 : vector<2x256xf32>
      %369 = arith.addf %364, %368 : vector<2x256xf32>
      %c2_i32_112 = arith.constant 2 : i32
      %370 = tpu.dynamic_rotate %16 by %c2_i32_112 dim 1 : vector<2x256xf32>, i32 -> vector<2x256xf32>
      %c71 = arith.constant 71 : index
      %c0_113 = arith.constant 0 : index
      %371 = vector.load %arg2[%c71, %c0_113] : memref<98x256xf32, #tpu.memory_space<vmem>>, vector<1x256xf32>
      %372 = vector.broadcast %371 : vector<1x256xf32> to vector<2x256xf32>
      %373 = arith.mulf %370, %372 : vector<2x256xf32>
      %374 = arith.addf %369, %373 : vector<2x256xf32>
      %c1_i32_114 = arith.constant 1 : i32
      %375 = tpu.dynamic_rotate %16 by %c1_i32_114 dim 1 : vector<2x256xf32>, i32 -> vector<2x256xf32>
      %c72 = arith.constant 72 : index
      %c0_115 = arith.constant 0 : index
      %376 = vector.load %arg2[%c72, %c0_115] : memref<98x256xf32, #tpu.memory_space<vmem>>, vector<1x256xf32>
      %377 = vector.broadcast %376 : vector<1x256xf32> to vector<2x256xf32>
      %378 = arith.mulf %375, %377 : vector<2x256xf32>
      %379 = arith.addf %374, %378 : vector<2x256xf32>
      %c73 = arith.constant 73 : index
      %c0_116 = arith.constant 0 : index
      %380 = vector.load %arg2[%c73, %c0_116] : memref<98x256xf32, #tpu.memory_space<vmem>>, vector<1x256xf32>
      %381 = vector.broadcast %380 : vector<1x256xf32> to vector<2x256xf32>
      %382 = arith.mulf %16, %381 : vector<2x256xf32>
      %383 = arith.addf %379, %382 : vector<2x256xf32>
      %c255_i32_117 = arith.constant 255 : i32
      %384 = tpu.dynamic_rotate %16 by %c255_i32_117 dim 1 : vector<2x256xf32>, i32 -> vector<2x256xf32>
      %c74 = arith.constant 74 : index
      %c0_118 = arith.constant 0 : index
      %385 = vector.load %arg2[%c74, %c0_118] : memref<98x256xf32, #tpu.memory_space<vmem>>, vector<1x256xf32>
      %386 = vector.broadcast %385 : vector<1x256xf32> to vector<2x256xf32>
      %387 = arith.mulf %384, %386 : vector<2x256xf32>
      %388 = arith.addf %383, %387 : vector<2x256xf32>
      %c254_i32_119 = arith.constant 254 : i32
      %389 = tpu.dynamic_rotate %16 by %c254_i32_119 dim 1 : vector<2x256xf32>, i32 -> vector<2x256xf32>
      %c75 = arith.constant 75 : index
      %c0_120 = arith.constant 0 : index
      %390 = vector.load %arg2[%c75, %c0_120] : memref<98x256xf32, #tpu.memory_space<vmem>>, vector<1x256xf32>
      %391 = vector.broadcast %390 : vector<1x256xf32> to vector<2x256xf32>
      %392 = arith.mulf %389, %391 : vector<2x256xf32>
      %393 = arith.addf %388, %392 : vector<2x256xf32>
      %c253_i32_121 = arith.constant 253 : i32
      %394 = tpu.dynamic_rotate %16 by %c253_i32_121 dim 1 : vector<2x256xf32>, i32 -> vector<2x256xf32>
      %c76 = arith.constant 76 : index
      %c0_122 = arith.constant 0 : index
      %395 = vector.load %arg2[%c76, %c0_122] : memref<98x256xf32, #tpu.memory_space<vmem>>, vector<1x256xf32>
      %396 = vector.broadcast %395 : vector<1x256xf32> to vector<2x256xf32>
      %397 = arith.mulf %394, %396 : vector<2x256xf32>
      %398 = arith.addf %393, %397 : vector<2x256xf32>
      %c243_i32_123 = arith.constant 243 : i32
      %399 = tpu.dynamic_rotate %16 by %c243_i32_123 dim 1 : vector<2x256xf32>, i32 -> vector<2x256xf32>
      %c77 = arith.constant 77 : index
      %c0_124 = arith.constant 0 : index
      %400 = vector.load %arg2[%c77, %c0_124] : memref<98x256xf32, #tpu.memory_space<vmem>>, vector<1x256xf32>
      %401 = vector.broadcast %400 : vector<1x256xf32> to vector<2x256xf32>
      %402 = arith.mulf %399, %401 : vector<2x256xf32>
      %403 = arith.addf %398, %402 : vector<2x256xf32>
      %c242_i32_125 = arith.constant 242 : i32
      %404 = tpu.dynamic_rotate %16 by %c242_i32_125 dim 1 : vector<2x256xf32>, i32 -> vector<2x256xf32>
      %c78 = arith.constant 78 : index
      %c0_126 = arith.constant 0 : index
      %405 = vector.load %arg2[%c78, %c0_126] : memref<98x256xf32, #tpu.memory_space<vmem>>, vector<1x256xf32>
      %406 = vector.broadcast %405 : vector<1x256xf32> to vector<2x256xf32>
      %407 = arith.mulf %404, %406 : vector<2x256xf32>
      %408 = arith.addf %403, %407 : vector<2x256xf32>
      %c241_i32_127 = arith.constant 241 : i32
      %409 = tpu.dynamic_rotate %16 by %c241_i32_127 dim 1 : vector<2x256xf32>, i32 -> vector<2x256xf32>
      %c79 = arith.constant 79 : index
      %c0_128 = arith.constant 0 : index
      %410 = vector.load %arg2[%c79, %c0_128] : memref<98x256xf32, #tpu.memory_space<vmem>>, vector<1x256xf32>
      %411 = vector.broadcast %410 : vector<1x256xf32> to vector<2x256xf32>
      %412 = arith.mulf %409, %411 : vector<2x256xf32>
      %413 = arith.addf %408, %412 : vector<2x256xf32>
      %c240_i32_129 = arith.constant 240 : i32
      %414 = tpu.dynamic_rotate %16 by %c240_i32_129 dim 1 : vector<2x256xf32>, i32 -> vector<2x256xf32>
      %c80 = arith.constant 80 : index
      %c0_130 = arith.constant 0 : index
      %415 = vector.load %arg2[%c80, %c0_130] : memref<98x256xf32, #tpu.memory_space<vmem>>, vector<1x256xf32>
      %416 = vector.broadcast %415 : vector<1x256xf32> to vector<2x256xf32>
      %417 = arith.mulf %414, %416 : vector<2x256xf32>
      %418 = arith.addf %413, %417 : vector<2x256xf32>
      %c239_i32_131 = arith.constant 239 : i32
      %419 = tpu.dynamic_rotate %16 by %c239_i32_131 dim 1 : vector<2x256xf32>, i32 -> vector<2x256xf32>
      %c81 = arith.constant 81 : index
      %c0_132 = arith.constant 0 : index
      %420 = vector.load %arg2[%c81, %c0_132] : memref<98x256xf32, #tpu.memory_space<vmem>>, vector<1x256xf32>
      %421 = vector.broadcast %420 : vector<1x256xf32> to vector<2x256xf32>
      %422 = arith.mulf %419, %421 : vector<2x256xf32>
      %423 = arith.addf %418, %422 : vector<2x256xf32>
      %c238_i32_133 = arith.constant 238 : i32
      %424 = tpu.dynamic_rotate %16 by %c238_i32_133 dim 1 : vector<2x256xf32>, i32 -> vector<2x256xf32>
      %c82 = arith.constant 82 : index
      %c0_134 = arith.constant 0 : index
      %425 = vector.load %arg2[%c82, %c0_134] : memref<98x256xf32, #tpu.memory_space<vmem>>, vector<1x256xf32>
      %426 = vector.broadcast %425 : vector<1x256xf32> to vector<2x256xf32>
      %427 = arith.mulf %424, %426 : vector<2x256xf32>
      %428 = arith.addf %423, %427 : vector<2x256xf32>
      %c237_i32_135 = arith.constant 237 : i32
      %429 = tpu.dynamic_rotate %16 by %c237_i32_135 dim 1 : vector<2x256xf32>, i32 -> vector<2x256xf32>
      %c83 = arith.constant 83 : index
      %c0_136 = arith.constant 0 : index
      %430 = vector.load %arg2[%c83, %c0_136] : memref<98x256xf32, #tpu.memory_space<vmem>>, vector<1x256xf32>
      %431 = vector.broadcast %430 : vector<1x256xf32> to vector<2x256xf32>
      %432 = arith.mulf %429, %431 : vector<2x256xf32>
      %433 = arith.addf %428, %432 : vector<2x256xf32>
      %c227_i32_137 = arith.constant 227 : i32
      %434 = tpu.dynamic_rotate %16 by %c227_i32_137 dim 1 : vector<2x256xf32>, i32 -> vector<2x256xf32>
      %c84 = arith.constant 84 : index
      %c0_138 = arith.constant 0 : index
      %435 = vector.load %arg2[%c84, %c0_138] : memref<98x256xf32, #tpu.memory_space<vmem>>, vector<1x256xf32>
      %436 = vector.broadcast %435 : vector<1x256xf32> to vector<2x256xf32>
      %437 = arith.mulf %434, %436 : vector<2x256xf32>
      %438 = arith.addf %433, %437 : vector<2x256xf32>
      %c226_i32_139 = arith.constant 226 : i32
      %439 = tpu.dynamic_rotate %16 by %c226_i32_139 dim 1 : vector<2x256xf32>, i32 -> vector<2x256xf32>
      %c85 = arith.constant 85 : index
      %c0_140 = arith.constant 0 : index
      %440 = vector.load %arg2[%c85, %c0_140] : memref<98x256xf32, #tpu.memory_space<vmem>>, vector<1x256xf32>
      %441 = vector.broadcast %440 : vector<1x256xf32> to vector<2x256xf32>
      %442 = arith.mulf %439, %441 : vector<2x256xf32>
      %443 = arith.addf %438, %442 : vector<2x256xf32>
      %c225_i32_141 = arith.constant 225 : i32
      %444 = tpu.dynamic_rotate %16 by %c225_i32_141 dim 1 : vector<2x256xf32>, i32 -> vector<2x256xf32>
      %c86 = arith.constant 86 : index
      %c0_142 = arith.constant 0 : index
      %445 = vector.load %arg2[%c86, %c0_142] : memref<98x256xf32, #tpu.memory_space<vmem>>, vector<1x256xf32>
      %446 = vector.broadcast %445 : vector<1x256xf32> to vector<2x256xf32>
      %447 = arith.mulf %444, %446 : vector<2x256xf32>
      %448 = arith.addf %443, %447 : vector<2x256xf32>
      %c224_i32_143 = arith.constant 224 : i32
      %449 = tpu.dynamic_rotate %16 by %c224_i32_143 dim 1 : vector<2x256xf32>, i32 -> vector<2x256xf32>
      %c87 = arith.constant 87 : index
      %c0_144 = arith.constant 0 : index
      %450 = vector.load %arg2[%c87, %c0_144] : memref<98x256xf32, #tpu.memory_space<vmem>>, vector<1x256xf32>
      %451 = vector.broadcast %450 : vector<1x256xf32> to vector<2x256xf32>
      %452 = arith.mulf %449, %451 : vector<2x256xf32>
      %453 = arith.addf %448, %452 : vector<2x256xf32>
      %c223_i32_145 = arith.constant 223 : i32
      %454 = tpu.dynamic_rotate %16 by %c223_i32_145 dim 1 : vector<2x256xf32>, i32 -> vector<2x256xf32>
      %c88 = arith.constant 88 : index
      %c0_146 = arith.constant 0 : index
      %455 = vector.load %arg2[%c88, %c0_146] : memref<98x256xf32, #tpu.memory_space<vmem>>, vector<1x256xf32>
      %456 = vector.broadcast %455 : vector<1x256xf32> to vector<2x256xf32>
      %457 = arith.mulf %454, %456 : vector<2x256xf32>
      %458 = arith.addf %453, %457 : vector<2x256xf32>
      %c222_i32_147 = arith.constant 222 : i32
      %459 = tpu.dynamic_rotate %16 by %c222_i32_147 dim 1 : vector<2x256xf32>, i32 -> vector<2x256xf32>
      %c89 = arith.constant 89 : index
      %c0_148 = arith.constant 0 : index
      %460 = vector.load %arg2[%c89, %c0_148] : memref<98x256xf32, #tpu.memory_space<vmem>>, vector<1x256xf32>
      %461 = vector.broadcast %460 : vector<1x256xf32> to vector<2x256xf32>
      %462 = arith.mulf %459, %461 : vector<2x256xf32>
      %463 = arith.addf %458, %462 : vector<2x256xf32>
      %c221_i32_149 = arith.constant 221 : i32
      %464 = tpu.dynamic_rotate %16 by %c221_i32_149 dim 1 : vector<2x256xf32>, i32 -> vector<2x256xf32>
      %c90 = arith.constant 90 : index
      %c0_150 = arith.constant 0 : index
      %465 = vector.load %arg2[%c90, %c0_150] : memref<98x256xf32, #tpu.memory_space<vmem>>, vector<1x256xf32>
      %466 = vector.broadcast %465 : vector<1x256xf32> to vector<2x256xf32>
      %467 = arith.mulf %464, %466 : vector<2x256xf32>
      %468 = arith.addf %463, %467 : vector<2x256xf32>
      %c211_i32_151 = arith.constant 211 : i32
      %469 = tpu.dynamic_rotate %16 by %c211_i32_151 dim 1 : vector<2x256xf32>, i32 -> vector<2x256xf32>
      %c91 = arith.constant 91 : index
      %c0_152 = arith.constant 0 : index
      %470 = vector.load %arg2[%c91, %c0_152] : memref<98x256xf32, #tpu.memory_space<vmem>>, vector<1x256xf32>
      %471 = vector.broadcast %470 : vector<1x256xf32> to vector<2x256xf32>
      %472 = arith.mulf %469, %471 : vector<2x256xf32>
      %473 = arith.addf %468, %472 : vector<2x256xf32>
      %c210_i32_153 = arith.constant 210 : i32
      %474 = tpu.dynamic_rotate %16 by %c210_i32_153 dim 1 : vector<2x256xf32>, i32 -> vector<2x256xf32>
      %c92 = arith.constant 92 : index
      %c0_154 = arith.constant 0 : index
      %475 = vector.load %arg2[%c92, %c0_154] : memref<98x256xf32, #tpu.memory_space<vmem>>, vector<1x256xf32>
      %476 = vector.broadcast %475 : vector<1x256xf32> to vector<2x256xf32>
      %477 = arith.mulf %474, %476 : vector<2x256xf32>
      %478 = arith.addf %473, %477 : vector<2x256xf32>
      %c209_i32_155 = arith.constant 209 : i32
      %479 = tpu.dynamic_rotate %16 by %c209_i32_155 dim 1 : vector<2x256xf32>, i32 -> vector<2x256xf32>
      %c93 = arith.constant 93 : index
      %c0_156 = arith.constant 0 : index
      %480 = vector.load %arg2[%c93, %c0_156] : memref<98x256xf32, #tpu.memory_space<vmem>>, vector<1x256xf32>
      %481 = vector.broadcast %480 : vector<1x256xf32> to vector<2x256xf32>
      %482 = arith.mulf %479, %481 : vector<2x256xf32>
      %483 = arith.addf %478, %482 : vector<2x256xf32>
      %c208_i32_157 = arith.constant 208 : i32
      %484 = tpu.dynamic_rotate %16 by %c208_i32_157 dim 1 : vector<2x256xf32>, i32 -> vector<2x256xf32>
      %c94 = arith.constant 94 : index
      %c0_158 = arith.constant 0 : index
      %485 = vector.load %arg2[%c94, %c0_158] : memref<98x256xf32, #tpu.memory_space<vmem>>, vector<1x256xf32>
      %486 = vector.broadcast %485 : vector<1x256xf32> to vector<2x256xf32>
      %487 = arith.mulf %484, %486 : vector<2x256xf32>
      %488 = arith.addf %483, %487 : vector<2x256xf32>
      %c207_i32_159 = arith.constant 207 : i32
      %489 = tpu.dynamic_rotate %16 by %c207_i32_159 dim 1 : vector<2x256xf32>, i32 -> vector<2x256xf32>
      %c95 = arith.constant 95 : index
      %c0_160 = arith.constant 0 : index
      %490 = vector.load %arg2[%c95, %c0_160] : memref<98x256xf32, #tpu.memory_space<vmem>>, vector<1x256xf32>
      %491 = vector.broadcast %490 : vector<1x256xf32> to vector<2x256xf32>
      %492 = arith.mulf %489, %491 : vector<2x256xf32>
      %493 = arith.addf %488, %492 : vector<2x256xf32>
      %c206_i32_161 = arith.constant 206 : i32
      %494 = tpu.dynamic_rotate %16 by %c206_i32_161 dim 1 : vector<2x256xf32>, i32 -> vector<2x256xf32>
      %c96 = arith.constant 96 : index
      %c0_162 = arith.constant 0 : index
      %495 = vector.load %arg2[%c96, %c0_162] : memref<98x256xf32, #tpu.memory_space<vmem>>, vector<1x256xf32>
      %496 = vector.broadcast %495 : vector<1x256xf32> to vector<2x256xf32>
      %497 = arith.mulf %494, %496 : vector<2x256xf32>
      %498 = arith.addf %493, %497 : vector<2x256xf32>
      %c205_i32_163 = arith.constant 205 : i32
      %499 = tpu.dynamic_rotate %16 by %c205_i32_163 dim 1 : vector<2x256xf32>, i32 -> vector<2x256xf32>
      %c97 = arith.constant 97 : index
      %c0_164 = arith.constant 0 : index
      %500 = vector.load %arg2[%c97, %c0_164] : memref<98x256xf32, #tpu.memory_space<vmem>>, vector<1x256xf32>
      %501 = vector.broadcast %500 : vector<1x256xf32> to vector<2x256xf32>
      %502 = arith.mulf %499, %501 : vector<2x256xf32>
      %503 = arith.addf %498, %502 : vector<2x256xf32>
      %504 = arith.negf %503 : vector<2x256xf32>
      %505 = math.exp %504 : vector<2x256xf32>
      %cst_165 = arith.constant 1.000000e+00 : f32
      %506 = vector.broadcast %cst_165 : f32 to vector<2x256xf32>
      %507 = arith.addf %506, %505 : vector<2x256xf32>
      %508 = arith.divf %506, %507 : vector<2x256xf32>
      %c0_166 = arith.constant 0 : index
      %c0_167 = arith.constant 0 : index
      %509 = vector.load %arg4[%c0_166, %c0_167] : memref<2x256xf32, #tpu.memory_space<vmem>>, vector<2x256xf32>
      tpu.vector_store %arg4[%c0_166, %c0_167], %508 {strides = array<i32>} : memref<2x256xf32, #tpu.memory_space<vmem>>, vector<2x256xf32>,
    } else {
    }
    return
  }
  func.func @transform_0(%arg0: i32, %arg1: i32) -> (i32, i32) {
    %c0_i32 = arith.constant 0 : i32
    %c0_i32_0 = arith.constant 0 : i32
    %c0_i32_1 = arith.constant 0 : i32
    return %c0_i32, %c0_i32_0 : i32, i32
  }
  func.func @transform_1(%arg0: i32, %arg1: i32) -> (i32, i32, i32) {
    %c0_i32 = arith.constant 0 : i32
    %c0_i32_0 = arith.constant 0 : i32
    return %arg0, %arg1, %c0_i32 : i32, i32, i32
  }
  func.func @transform_2(%arg0: i32, %arg1: i32) -> (i32, i32) {
    %c0_i32 = arith.constant 0 : i32
    %c0_i32_0 = arith.constant 0 : i32
    return %arg0, %c0_i32 : i32, i32
  }
}

</mosaic_0001>

<llo_original>
// kernel: spatial_attention.1
$region0: #{spatial_attention.1}
  #allocation0 [shape = 'u32[]', space=smem, size = 0x4, offset = 0x4, fixed_abs, tag = 'smem constant byte address 0x4 - core index']
  #allocation1 [shape = 'u32[144,128]{1,0:T(1,128)}', space=vmem, size = 0x12000, scoped, tag = 'internal scratch']
  #allocation2 [shape = 'f32[2,256]{1,0:T(2,128)}', space=vmem, size = 0x800, scoped, tag = 'scratch operand']
  #allocation3 [shape = 'f32[2,256]{1,0:T(2,128)}', space=vmem, size = 0x800, scoped, tag = 'scratch operand']
  %s0 = inlined_call_operand.vmem [shape: f32[98,256], index: 0, kind: input, shape index: {}]
  %s1 = inlined_call_operand.vmem [shape: f32[2,4,256], index: 1, kind: input, shape index: {}]
  %s2 = inlined_call_operand.vmem [shape: f32[2,256], index: 2, kind: output, shape index: {}]
  %s3 = sld [smem:[#allocation0]]
  $region26: #{spatial_attention.1} parent=0
    _
  %s5 = ssub.s32 1, %s3
  %s6 = scalar_select 0, %s5, %s3
  // Predicated region
  $region2: #{spatial_attention.1} parent=0 // pred_check
    _
  $region3: #{spatial_attention.1} parent=0 // pred_check_branch
    %8 = sbr.rel (0) target = $region5
  $region4: #{spatial_attention.1} parent=0 // pred_region
    _
  $region5: #{spatial_attention.1} parent=0 // pred_fallthru
    _
  // Predicated region
  $region6: #{spatial_attention.1} parent=0 // pred_check
    _
  $region7: #{spatial_attention.1} parent=0 // pred_check_branch
    %10 = sbr.rel (0) target = $region9
  $region8: #{spatial_attention.1} parent=0 // pred_region
    _
  $region9: #{spatial_attention.1} parent=0 // pred_fallthru
    _
  %p11 = scmp.eq.s32.totalorder 0, 0
  // Predicated region
  $region10: #{spatial_attention.1} parent=0 // pred_check
    %p12 = pneg %p11
  $region11: #{spatial_attention.1} parent=0 // pred_check_branch
    %14 = sbr.rel (%p12) target = $region13
  $region12: #{spatial_attention.1} parent=0 // pred_region
    %15 = vst [vmem:[#allocation2] sm:$0xf] 0.0
    %16 = vst [vmem:[#allocation3] sm:$0xf] -inf
  $region13: #{spatial_attention.1} parent=0 // pred_fallthru
    _
  %v17 = vld [vmem:[%s1] sm:$0xff]
  %v18 = vld [vmem:[%s1 + $0x8] sm:$0xff]
  %v19 = vld [vmem:[#allocation2] sm:$0xf]
  %v22 = vcombine.high %v17, %v17
  %v23 = vcombine.high %v18, %v18
  %vm26 = vcmask 1043456
  %v27 = vsel %vm26, %v17, 0.0
  %v28 = vrot.slane %v27, 4
  %v29 = vadd.f32 %v27, %v28
  %v30 = vrot.slane %v29, 2
  %v31 = vadd.f32 %v29, %v30
  %v32 = vrot.slane %v31, 1
  %v33 = vadd.f32 %v31, %v32
  %v34 = vsel %vm26, %v22, 0.0
  %v35 = vrot.slane %v34, 4
  %v36 = vadd.f32 %v34, %v35
  %v37 = vrot.slane %v36, 2
  %v38 = vadd.f32 %v36, %v37
  %v39 = vrot.slane %v38, 1
  %v40 = vadd.f32 %v38, %v39
  %v41 = vsel %vm26, %v18, 0.0
  %v42 = vrot.slane %v41, 4
  %v43 = vadd.f32 %v41, %v42
  %v44 = vrot.slane %v43, 2
  %v45 = vadd.f32 %v43, %v44
  %v46 = vrot.slane %v45, 1
  %v47 = vadd.f32 %v45, %v46
  %v48 = vsel %vm26, %v23, 0.0
  %v49 = vrot.slane %v48, 4
  %v50 = vadd.f32 %v48, %v49
  %v51 = vrot.slane %v50, 2
  %v52 = vadd.f32 %v50, %v51
  %v53 = vrot.slane %v52, 1
  %v54 = vadd.f32 %v52, %v53
  %v59 = vcombine.low %v33, %v40
  %v61 = vunpack.c.l.s4 1983009808
  %v62 = vunpack.c.0.s8 %v61
  %v63 = vlaneseq
  %v64 = vshrl.u32 %v63, 7
  %v65 = vsub.s32 %v62, %v64
  %v66 = vrot.slane %v59, %v65
  %v67 = vcombine.low %v47, %v54
  %v69 = vunpack.c.l.s4 1983009808
  %v70 = vunpack.c.0.s8 %v69
  %v71 = vlaneseq
  %v72 = vshrl.u32 %v71, 7
  %v73 = vsub.s32 %v70, %v72
  %v74 = vrot.slane %v67, %v73
  %vm75 = vcmask 1044484
  %v76 = vsel %vm75, %v66, %v66
  %vm77 = vcmask 1046534
  %v78 = vsel %vm77, %v66, %v76
  %v79 = vrot.slane %v74, 7
  %vm80 = vcmask 1041409
  %v81 = vsel %vm80, %v79, %v78
  %vm82 = vcmask 1043459
  %v83 = vsel %vm82, %v79, %v81
  %vm84 = vcmask 1045509
  %v85 = vsel %vm84, %v79, %v83
  %vm86 = vcmask 1047559
  %v87 = vsel %vm86, %v79, %v85
  %v89 = vadd.f32 %v19, %v87
  %90 = vst [vmem:[#allocation2] sm:$0xf] %v89
  %v91 = vld [vmem:[#allocation3] sm:$0xf]
  %v92 = vsel %vm26, %v17, -inf
  %v93 = vrot.slane %v92, 4
  %v94 = vmax.f32 %v92, %v93
  %v95 = vrot.slane %v94, 2
  %v96 = vmax.f32 %v94, %v95
  %v97 = vrot.slane %v96, 1
  %v98 = vmax.f32 %v96, %v97
  %v99 = vsel %vm26, %v22, -inf
  %v100 = vrot.slane %v99, 4
  %v101 = vmax.f32 %v99, %v100
  %v102 = vrot.slane %v101, 2
  %v103 = vmax.f32 %v101, %v102
  %v104 = vrot.slane %v103, 1
  %v105 = vmax.f32 %v103, %v104
  %v106 = vsel %vm26, %v18, -inf
  %v107 = vrot.slane %v106, 4
  %v108 = vmax.f32 %v106, %v107
  %v109 = vrot.slane %v108, 2
  %v110 = vmax.f32 %v108, %v109
  %v111 = vrot.slane %v110, 1
  %v112 = vmax.f32 %v110, %v111
  %v113 = vsel %vm26, %v23, -inf
  %v114 = vrot.slane %v113, 4
  %v115 = vmax.f32 %v113, %v114
  %v116 = vrot.slane %v115, 2
  %v117 = vmax.f32 %v115, %v116
  %v118 = vrot.slane %v117, 1
  %v119 = vmax.f32 %v117, %v118
  %v124 = vcombine.low %v98, %v105
  %v126 = vunpack.c.l.s4 1983009808
  %v127 = vunpack.c.0.s8 %v126
  %v128 = vlaneseq
  %v129 = vshrl.u32 %v128, 7
  %v130 = vsub.s32 %v127, %v129
  %v131 = vrot.slane %v124, %v130
  %v132 = vcombine.low %v112, %v119
  %v134 = vunpack.c.l.s4 1983009808
  %v135 = vunpack.c.0.s8 %v134
  %v136 = vlaneseq
  %v137 = vshrl.u32 %v136, 7
  %v138 = vsub.s32 %v135, %v137
  %v139 = vrot.slane %v132, %v138
  %v140 = vsel %vm75, %v131, %v131
  %v141 = vsel %vm77, %v131, %v140
  %v142 = vrot.slane %v139, 7
  %v143 = vsel %vm80, %v142, %v141
  %v144 = vsel %vm82, %v142, %v143
  %v145 = vsel %vm84, %v142, %v144
  %v146 = vsel %vm86, %v142, %v145
  %v148 = vmax.f32 %v91, %v146
  %149 = vst [vmem:[#allocation3] sm:$0xf] %v148
  // Predicated region
  $region14: #{spatial_attention.1} parent=0 // pred_check
    %p150 = pneg %p11
  $region15: #{spatial_attention.1} parent=0 // pred_check_branch
    %152 = sbr.rel (%p150) target = $region17
  $region16: #{spatial_attention.1} parent=0 // pred_region
    %v153 = vld [vmem:[#allocation2] sm:$0xf]
    %v154 = vld [vmem:[#allocation3] sm:$0xf]
    %v157 = vunpack.c.l.s4 1983009808
    %v158 = vunpack.c.0.s8 %v157
    %v159 = vlaneseq
    %v160 = vshrl.u32 %v159, 7
    %v161 = vsub.s32 %v158, %v160
    %v162 = vrot.slane %v153, %v161
    %v163 = vcombine.high %v162, %v162
    %166 = vrot.lane.b32.xlu0 %v162, 51
    %v167 = vpop.permute.xlu0 %166
    %168 = vrot.lane.b32.xlu0 %v163, 51
    %v169 = vpop.permute.xlu0 %168
    %v170 = vlaneseq
    %v171 = vand.u32 %v170, 127
    %vm172 = vcmp.lt.s32.totalorder %v171, 51
    %v173 = vsel %vm172, %v167, %v169
    %v174 = vsel %vm172, %v169, %v167
    %v175 = vld [vmem:[%s0] ss:$8 sm:$0x3]
    %v177 = vlaneseq
    %v178 = vshrl.u32 %v177, 7
    %v179 = vsub.s32 0, %v178
    %v180 = vrot.slane %v175, %v179
    %v181 = vlaneseq
    %v182 = vshrl.u32 %v181, 7
    %v183 = vsub.s32 1, %v182
    %v184 = vrot.slane %v175, %v183
    %v187 = vmul.f32 %v174, %v180
    %v188 = vmul.f32 %v173, %v184
    %189 = vrot.lane.b32.xlu0 %v162, 50
    %v190 = vpop.permute.xlu0 %189
    %191 = vrot.lane.b32.xlu0 %v163, 50
    %v192 = vpop.permute.xlu0 %191
    %vm193 = vcmp.lt.s32.totalorder %v171, 50
    %v194 = vsel %vm193, %v190, %v192
    %v195 = vsel %vm193, %v192, %v190
    %s196 = scalar_lea.vmem %s0, 1
    %v197 = vld [vmem:[%s196] ss:$8 sm:$0x3]
    %v199 = vlaneseq
    %v200 = vshrl.u32 %v199, 7
    %v201 = vsub.s32 0, %v200
    %v202 = vrot.slane %v197, %v201
    %v203 = vlaneseq
    %v204 = vshrl.u32 %v203, 7
    %v205 = vsub.s32 1, %v204
    %v206 = vrot.slane %v197, %v205
    %v209 = vmul.f32 %v195, %v202
    %v210 = vmul.f32 %v194, %v206
    %v211 = vadd.f32 %v187, %v209
    %v212 = vadd.f32 %v188, %v210
    %213 = vrot.lane.b32.xlu0 %v162, 49
    %v214 = vpop.permute.xlu0 %213
    %215 = vrot.lane.b32.xlu0 %v163, 49
    %v216 = vpop.permute.xlu0 %215
    %vm217 = vcmp.lt.s32.totalorder %v171, 49
    %v218 = vsel %vm217, %v214, %v216
    %v219 = vsel %vm217, %v216, %v214
    %s220 = scalar_lea.vmem %s0, 2
    %v221 = vld [vmem:[%s220] ss:$8 sm:$0x3]
    %v223 = vlaneseq
    %v224 = vshrl.u32 %v223, 7
    %v225 = vsub.s32 0, %v224
    %v226 = vrot.slane %v221, %v225
    %v227 = vlaneseq
    %v228 = vshrl.u32 %v227, 7
    %v229 = vsub.s32 1, %v228
    %v230 = vrot.slane %v221, %v229
    %v233 = vmul.f32 %v219, %v226
    %v234 = vmul.f32 %v218, %v230
    %v235 = vadd.f32 %v211, %v233
    %v236 = vadd.f32 %v212, %v234
    %237 = vrot.lane.b32.xlu0 %v162, 48
    %v238 = vpop.permute.xlu0 %237
    %239 = vrot.lane.b32.xlu0 %v163, 48
    %v240 = vpop.permute.xlu0 %239
    %vm241 = vcmp.lt.s32.totalorder %v171, 48
    %v242 = vsel %vm241, %v238, %v240
    %v243 = vsel %vm241, %v240, %v238
    %s244 = scalar_lea.vmem %s0, 3
    %v245 = vld [vmem:[%s244] ss:$8 sm:$0x3]
    %v247 = vlaneseq
    %v248 = vshrl.u32 %v247, 7
    %v249 = vsub.s32 0, %v248
    %v250 = vrot.slane %v245, %v249
    %v251 = vlaneseq
    %v252 = vshrl.u32 %v251, 7
    %v253 = vsub.s32 1, %v252
    %v254 = vrot.slane %v245, %v253
    %v257 = vmul.f32 %v243, %v250
    %v258 = vmul.f32 %v242, %v254
    %v259 = vadd.f32 %v235, %v257
    %v260 = vadd.f32 %v236, %v258
    %261 = vrot.lane.b32.xlu0 %v162, 47
    %v262 = vpop.permute.xlu0 %261
    %263 = vrot.lane.b32.xlu0 %v163, 47
    %v264 = vpop.permute.xlu0 %263
    %vm265 = vcmp.lt.s32.totalorder %v171, 47
    %v266 = vsel %vm265, %v262, %v264
    %v267 = vsel %vm265, %v264, %v262
    %s268 = scalar_lea.vmem %s0, 4
    %v269 = vld [vmem:[%s268] ss:$8 sm:$0x3]
    %v271 = vlaneseq
    %v272 = vshrl.u32 %v271, 7
    %v273 = vsub.s32 0, %v272
    %v274 = vrot.slane %v269, %v273
    %v275 = vlaneseq
    %v276 = vshrl.u32 %v275, 7
    %v277 = vsub.s32 1, %v276
    %v278 = vrot.slane %v269, %v277
    %v281 = vmul.f32 %v267, %v274
    %v282 = vmul.f32 %v266, %v278
    %v283 = vadd.f32 %v259, %v281
    %v284 = vadd.f32 %v260, %v282
    %285 = vrot.lane.b32.xlu0 %v162, 46
    %v286 = vpop.permute.xlu0 %285
    %287 = vrot.lane.b32.xlu0 %v163, 46
    %v288 = vpop.permute.xlu0 %287
    %vm289 = vcmp.lt.s32.totalorder %v171, 46
    %v290 = vsel %vm289, %v286, %v288
    %v291 = vsel %vm289, %v288, %v286
    %s292 = scalar_lea.vmem %s0, 5
    %v293 = vld [vmem:[%s292] ss:$8 sm:$0x3]
    %v295 = vlaneseq
    %v296 = vshrl.u32 %v295, 7
    %v297 = vsub.s32 0, %v296
    %v298 = vrot.slane %v293, %v297
    %v299 = vlaneseq
    %v300 = vshrl.u32 %v299, 7
    %v301 = vsub.s32 1, %v300
    %v302 = vrot.slane %v293, %v301
    %v305 = vmul.f32 %v291, %v298
    %v306 = vmul.f32 %v290, %v302
    %v307 = vadd.f32 %v283, %v305
    %v308 = vadd.f32 %v284, %v306
    %309 = vrot.lane.b32.xlu0 %v162, 45
    %v310 = vpop.permute.xlu0 %309
    %311 = vrot.lane.b32.xlu0 %v163, 45
    %v312 = vpop.permute.xlu0 %311
    %vm313 = vcmp.lt.s32.totalorder %v171, 45
    %v314 = vsel %vm313, %v310, %v312
    %v315 = vsel %vm313, %v312, %v310
    %s316 = scalar_lea.vmem %s0, 6
    %v317 = vld [vmem:[%s316] ss:$8 sm:$0x3]
    %v319 = vlaneseq
    %v320 = vshrl.u32 %v319, 7
    %v321 = vsub.s32 0, %v320
    %v322 = vrot.slane %v317, %v321
    %v323 = vlaneseq
    %v324 = vshrl.u32 %v323, 7
    %v325 = vsub.s32 1, %v324
    %v326 = vrot.slane %v317, %v325
    %v329 = vmul.f32 %v315, %v322
    %v330 = vmul.f32 %v314, %v326
    %v331 = vadd.f32 %v307, %v329
    %v332 = vadd.f32 %v308, %v330
    %333 = vrot.lane.b32.xlu0 %v162, 35
    %v334 = vpop.permute.xlu0 %333
    %335 = vrot.lane.b32.xlu0 %v163, 35
    %v336 = vpop.permute.xlu0 %335
    %vm337 = vcmp.lt.s32.totalorder %v171, 35
    %v338 = vsel %vm337, %v334, %v336
    %v339 = vsel %vm337, %v336, %v334
    %s340 = scalar_lea.vmem %s0, 7
    %v341 = vld [vmem:[%s340] ss:$8 sm:$0x3]
    %v343 = vlaneseq
    %v344 = vshrl.u32 %v343, 7
    %v345 = vsub.s32 0, %v344
    %v346 = vrot.slane %v341, %v345
    %v347 = vlaneseq
    %v348 = vshrl.u32 %v347, 7
    %v349 = vsub.s32 1, %v348
    %v350 = vrot.slane %v341, %v349
    %v353 = vmul.f32 %v339, %v346
    %v354 = vmul.f32 %v338, %v350
    %v355 = vadd.f32 %v331, %v353
    %v356 = vadd.f32 %v332, %v354
    %357 = vrot.lane.b32.xlu0 %v162, 34
    %v358 = vpop.permute.xlu0 %357
    %359 = vrot.lane.b32.xlu0 %v163, 34
    %v360 = vpop.permute.xlu0 %359
    %vm361 = vcmp.lt.s32.totalorder %v171, 34
    %v362 = vsel %vm361, %v358, %v360
    %v363 = vsel %vm361, %v360, %v358
    %s364 = scalar_lea.vmem %s0, 16
    %v365 = vld [vmem:[%s364] ss:$8 sm:$0x3]
    %v367 = vlaneseq
    %v368 = vshrl.u32 %v367, 7
    %v369 = vsub.s32 0, %v368
    %v370 = vrot.slane %v365, %v369
    %v371 = vlaneseq
    %v372 = vshrl.u32 %v371, 7
    %v373 = vsub.s32 1, %v372
    %v374 = vrot.slane %v365, %v373
    %v377 = vmul.f32 %v363, %v370
    %v378 = vmul.f32 %v362, %v374
    %v379 = vadd.f32 %v355, %v377
    %v380 = vadd.f32 %v356, %v378
    %381 = vrot.lane.b32.xlu0 %v162, 33
    %v382 = vpop.permute.xlu0 %381
    %383 = vrot.lane.b32.xlu0 %v163, 33
    %v384 = vpop.permute.xlu0 %383
    %vm385 = vcmp.lt.s32.totalorder %v171, 33
    %v386 = vsel %vm385, %v382, %v384
    %v387 = vsel %vm385, %v384, %v382
    %s388 = scalar_lea.vmem %s0, 17
    %v389 = vld [vmem:[%s388] ss:$8 sm:$0x3]
    %v391 = vlaneseq
    %v392 = vshrl.u32 %v391, 7
    %v393 = vsub.s32 0, %v392
    %v394 = vrot.slane %v389, %v393
    %v395 = vlaneseq
    %v396 = vshrl.u32 %v395, 7
    %v397 = vsub.s32 1, %v396
    %v398 = vrot.slane %v389, %v397
    %v401 = vmul.f32 %v387, %v394
    %v402 = vmul.f32 %v386, %v398
    %v403 = vadd.f32 %v379, %v401
    %v404 = vadd.f32 %v380, %v402
    %405 = vrot.lane.b32.xlu0 %v162, 32
    %v406 = vpop.permute.xlu0 %405
    %407 = vrot.lane.b32.xlu0 %v163, 32
    %v408 = vpop.permute.xlu0 %407
    %vm409 = vcmp.lt.s32.totalorder %v171, 32
    %v410 = vsel %vm409, %v406, %v408
    %v411 = vsel %vm409, %v408, %v406
    %s412 = scalar_lea.vmem %s0, 18
    %v413 = vld [vmem:[%s412] ss:$8 sm:$0x3]
    %v415 = vlaneseq
    %v416 = vshrl.u32 %v415, 7
    %v417 = vsub.s32 0, %v416
    %v418 = vrot.slane %v413, %v417
    %v419 = vlaneseq
    %v420 = vshrl.u32 %v419, 7
    %v421 = vsub.s32 1, %v420
    %v422 = vrot.slane %v413, %v421
    %v425 = vmul.f32 %v411, %v418
    %v426 = vmul.f32 %v410, %v422
    %v427 = vadd.f32 %v403, %v425
    %v428 = vadd.f32 %v404, %v426
    %429 = vrot.lane.b32.xlu0 %v162, 31
    %v430 = vpop.permute.xlu0 %429
    %431 = vrot.lane.b32.xlu0 %v163, 31
    %v432 = vpop.permute.xlu0 %431
    %vm433 = vcmp.lt.s32.totalorder %v171, 31
    %v434 = vsel %vm433, %v430, %v432
    %v435 = vsel %vm433, %v432, %v430
    %s436 = scalar_lea.vmem %s0, 19
    %v437 = vld [vmem:[%s436] ss:$8 sm:$0x3]
    %v439 = vlaneseq
    %v440 = vshrl.u32 %v439, 7
    %v441 = vsub.s32 0, %v440
    %v442 = vrot.slane %v437, %v441
    %v443 = vlaneseq
    %v444 = vshrl.u32 %v443, 7
    %v445 = vsub.s32 1, %v444
    %v446 = vrot.slane %v437, %v445
    %v449 = vmul.f32 %v435, %v442
    %v450 = vmul.f32 %v434, %v446
    %v451 = vadd.f32 %v427, %v449
    %v452 = vadd.f32 %v428, %v450
    %453 = vrot.lane.b32.xlu0 %v162, 30
    %v454 = vpop.permute.xlu0 %453
    %455 = vrot.lane.b32.xlu0 %v163, 30
    %v456 = vpop.permute.xlu0 %455
    %vm457 = vcmp.lt.s32.totalorder %v171, 30
    %v458 = vsel %vm457, %v454, %v456
    %v459 = vsel %vm457, %v456, %v454
    %s460 = scalar_lea.vmem %s0, 20
    %v461 = vld [vmem:[%s460] ss:$8 sm:$0x3]
    %v463 = vlaneseq
    %v464 = vshrl.u32 %v463, 7
    %v465 = vsub.s32 0, %v464
    %v466 = vrot.slane %v461, %v465
    %v467 = vlaneseq
    %v468 = vshrl.u32 %v467, 7
    %v469 = vsub.s32 1, %v468
    %v470 = vrot.slane %v461, %v469
    %v473 = vmul.f32 %v459, %v466
    %v474 = vmul.f32 %v458, %v470
    %v475 = vadd.f32 %v451, %v473
    %v476 = vadd.f32 %v452, %v474
    %477 = vrot.lane.b32.xlu0 %v162, 29
    %v478 = vpop.permute.xlu0 %477
    %479 = vrot.lane.b32.xlu0 %v163, 29
    %v480 = vpop.permute.xlu0 %479
    %vm481 = vcmp.lt.s32.totalorder %v171, 29
    %v482 = vsel %vm481, %v478, %v480
    %v483 = vsel %vm481, %v480, %v478
    %s484 = scalar_lea.vmem %s0, 21
    %v485 = vld [vmem:[%s484] ss:$8 sm:$0x3]
    %v487 = vlaneseq
    %v488 = vshrl.u32 %v487, 7
    %v489 = vsub.s32 0, %v488
    %v490 = vrot.slane %v485, %v489
    %v491 = vlaneseq
    %v492 = vshrl.u32 %v491, 7
    %v493 = vsub.s32 1, %v492
    %v494 = vrot.slane %v485, %v493
    %v497 = vmul.f32 %v483, %v490
    %v498 = vmul.f32 %v482, %v494
    %v499 = vadd.f32 %v475, %v497
    %v500 = vadd.f32 %v476, %v498
    %501 = vrot.lane.b32.xlu0 %v162, 19
    %v502 = vpop.permute.xlu0 %501
    %503 = vrot.lane.b32.xlu0 %v163, 19
    %v504 = vpop.permute.xlu0 %503
    %vm505 = vcmp.lt.s32.totalorder %v171, 19
    %v506 = vsel %vm505, %v502, %v504
    %v507 = vsel %vm505, %v504, %v502
    %s508 = scalar_lea.vmem %s0, 22
    %v509 = vld [vmem:[%s508] ss:$8 sm:$0x3]
    %v511 = vlaneseq
    %v512 = vshrl.u32 %v511, 7
    %v513 = vsub.s32 0, %v512
    %v514 = vrot.slane %v509, %v513
    %v515 = vlaneseq
    %v516 = vshrl.u32 %v515, 7
    %v517 = vsub.s32 1, %v516
    %v518 = vrot.slane %v509, %v517
    %v521 = vmul.f32 %v507, %v514
    %v522 = vmul.f32 %v506, %v518
    %v523 = vadd.f32 %v499, %v521
    %v524 = vadd.f32 %v500, %v522
    %525 = vrot.lane.b32.xlu0 %v162, 18
    %v526 = vpop.permute.xlu0 %525
    %527 = vrot.lane.b32.xlu0 %v163, 18
    %v528 = vpop.permute.xlu0 %527
    %vm529 = vcmp.lt.s32.totalorder %v171, 18
    %v530 = vsel %vm529, %v526, %v528
    %v531 = vsel %vm529, %v528, %v526
    %s532 = scalar_lea.vmem %s0, 23
    %v533 = vld [vmem:[%s532] ss:$8 sm:$0x3]
    %v535 = vlaneseq
    %v536 = vshrl.u32 %v535, 7
    %v537 = vsub.s32 0, %v536
    %v538 = vrot.slane %v533, %v537
    %v539 = vlaneseq
    %v540 = vshrl.u32 %v539, 7
    %v541 = vsub.s32 1, %v540
    %v542 = vrot.slane %v533, %v541
    %v545 = vmul.f32 %v531, %v538
    %v546 = vmul.f32 %v530, %v542
    %v547 = vadd.f32 %v523, %v545
    %v548 = vadd.f32 %v524, %v546
    %549 = vrot.lane.b32.xlu0 %v162, 17
    %v550 = vpop.permute.xlu0 %549
    %551 = vrot.lane.b32.xlu0 %v163, 17
    %v552 = vpop.permute.xlu0 %551
    %vm553 = vcmp.lt.s32.totalorder %v171, 17
    %v554 = vsel %vm553, %v550, %v552
    %v555 = vsel %vm553, %v552, %v550
    %s556 = scalar_lea.vmem %s0, 32
    %v557 = vld [vmem:[%s556] ss:$8 sm:$0x3]
    %v559 = vlaneseq
    %v560 = vshrl.u32 %v559, 7
    %v561 = vsub.s32 0, %v560
    %v562 = vrot.slane %v557, %v561
    %v563 = vlaneseq
    %v564 = vshrl.u32 %v563, 7
    %v565 = vsub.s32 1, %v564
    %v566 = vrot.slane %v557, %v565
    %v569 = vmul.f32 %v555, %v562
    %v570 = vmul.f32 %v554, %v566
    %v571 = vadd.f32 %v547, %v569
    %v572 = vadd.f32 %v548, %v570
    %573 = vrot.lane.b32.xlu0 %v162, 16
    %v574 = vpop.permute.xlu0 %573
    %575 = vrot.lane.b32.xlu0 %v163, 16
    %v576 = vpop.permute.xlu0 %575
    %vm577 = vcmp.lt.s32.totalorder %v171, 16
    %v578 = vsel %vm577, %v574, %v576
    %v579 = vsel %vm577, %v576, %v574
    %s580 = scalar_lea.vmem %s0, 33
    %v581 = vld [vmem:[%s580] ss:$8 sm:$0x3]
    %v583 = vlaneseq
    %v584 = vshrl.u32 %v583, 7
    %v585 = vsub.s32 0, %v584
    %v586 = vrot.slane %v581, %v585
    %v587 = vlaneseq
    %v588 = vshrl.u32 %v587, 7
    %v589 = vsub.s32 1, %v588
    %v590 = vrot.slane %v581, %v589
    %v593 = vmul.f32 %v579, %v586
    %v594 = vmul.f32 %v578, %v590
    %v595 = vadd.f32 %v571, %v593
    %v596 = vadd.f32 %v572, %v594
    %597 = vrot.lane.b32.xlu0 %v162, 15
    %v598 = vpop.permute.xlu0 %597
    %599 = vrot.lane.b32.xlu0 %v163, 15
    %v600 = vpop.permute.xlu0 %599
    %vm601 = vcmp.lt.s32.totalorder %v171, 15
    %v602 = vsel %vm601, %v598, %v600
    %v603 = vsel %vm601, %v600, %v598
    %s604 = scalar_lea.vmem %s0, 34
    %v605 = vld [vmem:[%s604] ss:$8 sm:$0x3]
    %v607 = vlaneseq
    %v608 = vshrl.u32 %v607, 7
    %v609 = vsub.s32 0, %v608
    %v610 = vrot.slane %v605, %v609
    %v611 = vlaneseq
    %v612 = vshrl.u32 %v611, 7
    %v613 = vsub.s32 1, %v612
    %v614 = vrot.slane %v605, %v613
    %v617 = vmul.f32 %v603, %v610
    %v618 = vmul.f32 %v602, %v614
    %v619 = vadd.f32 %v595, %v617
    %v620 = vadd.f32 %v596, %v618
    %621 = vrot.lane.b32.xlu0 %v162, 14
    %v622 = vpop.permute.xlu0 %621
    %623 = vrot.lane.b32.xlu0 %v163, 14
    %v624 = vpop.permute.xlu0 %623
    %vm625 = vcmp.lt.s32.totalorder %v171, 14
    %v626 = vsel %vm625, %v622, %v624
    %v627 = vsel %vm625, %v624, %v622
    %s628 = scalar_lea.vmem %s0, 35
    %v629 = vld [vmem:[%s628] ss:$8 sm:$0x3]
    %v631 = vlaneseq
    %v632 = vshrl.u32 %v631, 7
    %v633 = vsub.s32 0, %v632
    %v634 = vrot.slane %v629, %v633
    %v635 = vlaneseq
    %v636 = vshrl.u32 %v635, 7
    %v637 = vsub.s32 1, %v636
    %v638 = vrot.slane %v629, %v637
    %v641 = vmul.f32 %v627, %v634
    %v642 = vmul.f32 %v626, %v638
    %v643 = vadd.f32 %v619, %v641
    %v644 = vadd.f32 %v620, %v642
    %645 = vrot.lane.b32.xlu0 %v162, 13
    %v646 = vpop.permute.xlu0 %645
    %647 = vrot.lane.b32.xlu0 %v163, 13
    %v648 = vpop.permute.xlu0 %647
    %vm649 = vcmp.lt.s32.totalorder %v171, 13
    %v650 = vsel %vm649, %v646, %v648
    %v651 = vsel %vm649, %v648, %v646
    %s652 = scalar_lea.vmem %s0, 36
    %v653 = vld [vmem:[%s652] ss:$8 sm:$0x3]
    %v655 = vlaneseq
    %v656 = vshrl.u32 %v655, 7
    %v657 = vsub.s32 0, %v656
    %v658 = vrot.slane %v653, %v657
    %v659 = vlaneseq
    %v660 = vshrl.u32 %v659, 7
    %v661 = vsub.s32 1, %v660
    %v662 = vrot.slane %v653, %v661
    %v665 = vmul.f32 %v651, %v658
    %v666 = vmul.f32 %v650, %v662
    %v667 = vadd.f32 %v643, %v665
    %v668 = vadd.f32 %v644, %v666
    %669 = vrot.lane.b32.xlu0 %v162, 3
    %v670 = vpop.permute.xlu0 %669
    %671 = vrot.lane.b32.xlu0 %v163, 3
    %v672 = vpop.permute.xlu0 %671
    %vm673 = vcmp.lt.s32.totalorder %v171, 3
    %v674 = vsel %vm673, %v670, %v672
    %v675 = vsel %vm673, %v672, %v670
    %s676 = scalar_lea.vmem %s0, 37
    %v677 = vld [vmem:[%s676] ss:$8 sm:$0x3]
    %v679 = vlaneseq
    %v680 = vshrl.u32 %v679, 7
    %v681 = vsub.s32 0, %v680
    %v682 = vrot.slane %v677, %v681
    %v683 = vlaneseq
    %v684 = vshrl.u32 %v683, 7
    %v685 = vsub.s32 1, %v684
    %v686 = vrot.slane %v677, %v685
    %v689 = vmul.f32 %v675, %v682
    %v690 = vmul.f32 %v674, %v686
    %v691 = vadd.f32 %v667, %v689
    %v692 = vadd.f32 %v668, %v690
    %693 = vrot.lane.b32.xlu0 %v162, 2
    %v694 = vpop.permute.xlu0 %693
    %695 = vrot.lane.b32.xlu0 %v163, 2
    %v696 = vpop.permute.xlu0 %695
    %vm697 = vcmp.lt.s32.totalorder %v171, 2
    %v698 = vsel %vm697, %v694, %v696
    %v699 = vsel %vm697, %v696, %v694
    %s700 = scalar_lea.vmem %s0, 38
    %v701 = vld [vmem:[%s700] ss:$8 sm:$0x3]
    %v703 = vlaneseq
    %v704 = vshrl.u32 %v703, 7
    %v705 = vsub.s32 0, %v704
    %v706 = vrot.slane %v701, %v705
    %v707 = vlaneseq
    %v708 = vshrl.u32 %v707, 7
    %v709 = vsub.s32 1, %v708
    %v710 = vrot.slane %v701, %v709
    %v713 = vmul.f32 %v699, %v706
    %v714 = vmul.f32 %v698, %v710
    %v715 = vadd.f32 %v691, %v713
    %v716 = vadd.f32 %v692, %v714
    %717 = vrot.lane.b32.xlu0 %v162, 1
    %v718 = vpop.permute.xlu0 %717
    %719 = vrot.lane.b32.xlu0 %v163, 1
    %v720 = vpop.permute.xlu0 %719
    %vm721 = vcmp.lt.s32.totalorder %v171, 1
    %v722 = vsel %vm721, %v718, %v720
    %v723 = vsel %vm721, %v720, %v718
    %s724 = scalar_lea.vmem %s0, 39
    %v725 = vld [vmem:[%s724] ss:$8 sm:$0x3]
    %v727 = vlaneseq
    %v728 = vshrl.u32 %v727, 7
    %v729 = vsub.s32 0, %v728
    %v730 = vrot.slane %v725, %v729
    %v731 = vlaneseq
    %v732 = vshrl.u32 %v731, 7
    %v733 = vsub.s32 1, %v732
    %v734 = vrot.slane %v725, %v733
    %v737 = vmul.f32 %v723, %v730
    %v738 = vmul.f32 %v722, %v734
    %v739 = vadd.f32 %v715, %v737
    %v740 = vadd.f32 %v716, %v738
    %s741 = scalar_lea.vmem %s0, 48
    %v742 = vld [vmem:[%s741] ss:$8 sm:$0x3]
    %v744 = vlaneseq
    %v745 = vshrl.u32 %v744, 7
    %v746 = vsub.s32 0, %v745
    %v747 = vrot.slane %v742, %v746
    %v748 = vlaneseq
    %v749 = vshrl.u32 %v748, 7
    %v750 = vsub.s32 1, %v749
    %v751 = vrot.slane %v742, %v750
    %v752 = vcombine.low %v747, %v751
    %v754 = vunpack.c.l.s4 1983009808
    %v755 = vunpack.c.0.s8 %v754
    %v756 = vlaneseq
    %v757 = vshrl.u32 %v756, 7
    %v758 = vsub.s32 %v755, %v757
    %v759 = vrot.slane %v752, %v758
    %v761 = vmul.f32 %v153, %v759
    %v764 = vunpack.c.l.s4 1983009808
    %v765 = vunpack.c.0.s8 %v764
    %v766 = vlaneseq
    %v767 = vshrl.u32 %v766, 7
    %v768 = vsub.s32 %v765, %v767
    %v769 = vrot.slane %v761, %v768
    %v770 = vcombine.high %v769, %v769
    %v773 = vadd.f32 %v739, %v769
    %v774 = vadd.f32 %v740, %v770
    %775 = vrot.lane.b32.xlu0 %v162, 127
    %v776 = vpop.permute.xlu0 %775
    %777 = vrot.lane.b32.xlu0 %v163, 127
    %v778 = vpop.permute.xlu0 %777
    %vm779 = vcmp.lt.s32.totalorder %v171, 127
    %v780 = vsel %vm779, %v776, %v778
    %v781 = vsel %vm779, %v778, %v776
    %s782 = scalar_lea.vmem %s0, 49
    %v783 = vld [vmem:[%s782] ss:$8 sm:$0x3]
    %v785 = vlaneseq
    %v786 = vshrl.u32 %v785, 7
    %v787 = vsub.s32 0, %v786
    %v788 = vrot.slane %v783, %v787
    %v789 = vlaneseq
    %v790 = vshrl.u32 %v789, 7
    %v791 = vsub.s32 1, %v790
    %v792 = vrot.slane %v783, %v791
    %v795 = vmul.f32 %v780, %v788
    %v796 = vmul.f32 %v781, %v792
    %v797 = vadd.f32 %v773, %v795
    %v798 = vadd.f32 %v774, %v796
    %799 = vrot.lane.b32.xlu0 %v162, 126
    %v800 = vpop.permute.xlu0 %799
    %801 = vrot.lane.b32.xlu0 %v163, 126
    %v802 = vpop.permute.xlu0 %801
    %vm803 = vcmp.lt.s32.totalorder %v171, 126
    %v804 = vsel %vm803, %v800, %v802
    %v805 = vsel %vm803, %v802, %v800
    %s806 = scalar_lea.vmem %s0, 50
    %v807 = vld [vmem:[%s806] ss:$8 sm:$0x3]
    %v809 = vlaneseq
    %v810 = vshrl.u32 %v809, 7
    %v811 = vsub.s32 0, %v810
    %v812 = vrot.slane %v807, %v811
    %v813 = vlaneseq
    %v814 = vshrl.u32 %v813, 7
    %v815 = vsub.s32 1, %v814
    %v816 = vrot.slane %v807, %v815
    %v819 = vmul.f32 %v804, %v812
    %v820 = vmul.f32 %v805, %v816
    %v821 = vadd.f32 %v797, %v819
    %v822 = vadd.f32 %v798, %v820
    %823 = vrot.lane.b32.xlu0 %v162, 125
    %v824 = vpop.permute.xlu0 %823
    %825 = vrot.lane.b32.xlu0 %v163, 125
    %v826 = vpop.permute.xlu0 %825
    %vm827 = vcmp.lt.s32.totalorder %v171, 125
    %v828 = vsel %vm827, %v824, %v826
    %v829 = vsel %vm827, %v826, %v824
    %s830 = scalar_lea.vmem %s0, 51
    %v831 = vld [vmem:[%s830] ss:$8 sm:$0x3]
    %v833 = vlaneseq
    %v834 = vshrl.u32 %v833, 7
    %v835 = vsub.s32 0, %v834
    %v836 = vrot.slane %v831, %v835
    %v837 = vlaneseq
    %v838 = vshrl.u32 %v837, 7
    %v839 = vsub.s32 1, %v838
    %v840 = vrot.slane %v831, %v839
    %v843 = vmul.f32 %v828, %v836
    %v844 = vmul.f32 %v829, %v840
    %v845 = vadd.f32 %v821, %v843
    %v846 = vadd.f32 %v822, %v844
    %847 = vrot.lane.b32.xlu0 %v162, 115
    %v848 = vpop.permute.xlu0 %847
    %849 = vrot.lane.b32.xlu0 %v163, 115
    %v850 = vpop.permute.xlu0 %849
    %vm851 = vcmp.lt.s32.totalorder %v171, 115
    %v852 = vsel %vm851, %v848, %v850
    %v853 = vsel %vm851, %v850, %v848
    %s854 = scalar_lea.vmem %s0, 52
    %v855 = vld [vmem:[%s854] ss:$8 sm:$0x3]
    %v857 = vlaneseq
    %v858 = vshrl.u32 %v857, 7
    %v859 = vsub.s32 0, %v858
    %v860 = vrot.slane %v855, %v859
    %v861 = vlaneseq
    %v862 = vshrl.u32 %v861, 7
    %v863 = vsub.s32 1, %v862
    %v864 = vrot.slane %v855, %v863
    %v867 = vmul.f32 %v852, %v860
    %v868 = vmul.f32 %v853, %v864
    %v869 = vadd.f32 %v845, %v867
    %v870 = vadd.f32 %v846, %v868
    %871 = vrot.lane.b32.xlu0 %v162, 114
    %v872 = vpop.permute.xlu0 %871
    %873 = vrot.lane.b32.xlu0 %v163, 114
    %v874 = vpop.permute.xlu0 %873
    %vm875 = vcmp.lt.s32.totalorder %v171, 114
    %v876 = vsel %vm875, %v872, %v874
    %v877 = vsel %vm875, %v874, %v872
    %s878 = scalar_lea.vmem %s0, 53
    %v879 = vld [vmem:[%s878] ss:$8 sm:$0x3]
    %v881 = vlaneseq
    %v882 = vshrl.u32 %v881, 7
    %v883 = vsub.s32 0, %v882
    %v884 = vrot.slane %v879, %v883
    %v885 = vlaneseq
    %v886 = vshrl.u32 %v885, 7
    %v887 = vsub.s32 1, %v886
    %v888 = vrot.slane %v879, %v887
    %v891 = vmul.f32 %v876, %v884
    %v892 = vmul.f32 %v877, %v888
    %v893 = vadd.f32 %v869, %v891
    %v894 = vadd.f32 %v870, %v892
    %895 = vrot.lane.b32.xlu0 %v162, 113
    %v896 = vpop.permute.xlu0 %895
    %897 = vrot.lane.b32.xlu0 %v163, 113
    %v898 = vpop.permute.xlu0 %897
    %vm899 = vcmp.lt.s32.totalorder %v171, 113
    %v900 = vsel %vm899, %v896, %v898
    %v901 = vsel %vm899, %v898, %v896
    %s902 = scalar_lea.vmem %s0, 54
    %v903 = vld [vmem:[%s902] ss:$8 sm:$0x3]
    %v905 = vlaneseq
    %v906 = vshrl.u32 %v905, 7
    %v907 = vsub.s32 0, %v906
    %v908 = vrot.slane %v903, %v907
    %v909 = vlaneseq
    %v910 = vshrl.u32 %v909, 7
    %v911 = vsub.s32 1, %v910
    %v912 = vrot.slane %v903, %v911
    %v915 = vmul.f32 %v900, %v908
    %v916 = vmul.f32 %v901, %v912
    %v917 = vadd.f32 %v893, %v915
    %v918 = vadd.f32 %v894, %v916
    %919 = vrot.lane.b32.xlu0 %v162, 112
    %v920 = vpop.permute.xlu0 %919
    %921 = vrot.lane.b32.xlu0 %v163, 112
    %v922 = vpop.permute.xlu0 %921
    %vm923 = vcmp.lt.s32.totalorder %v171, 112
    %v924 = vsel %vm923, %v920, %v922
    %v925 = vsel %vm923, %v922, %v920
    %s926 = scalar_lea.vmem %s0, 55
    %v927 = vld [vmem:[%s926] ss:$8 sm:$0x3]
    %v929 = vlaneseq
    %v930 = vshrl.u32 %v929, 7
    %v931 = vsub.s32 0, %v930
    %v932 = vrot.slane %v927, %v931
    %v933 = vlaneseq
    %v934 = vshrl.u32 %v933, 7
    %v935 = vsub.s32 1, %v934
    %v936 = vrot.slane %v927, %v935
    %v939 = vmul.f32 %v924, %v932
    %v940 = vmul.f32 %v925, %v936
    %v941 = vadd.f32 %v917, %v939
    %v942 = vadd.f32 %v918, %v940
    %943 = vrot.lane.b32.xlu0 %v162, 111
    %v944 = vpop.permute.xlu0 %943
    %945 = vrot.lane.b32.xlu0 %v163, 111
    %v946 = vpop.permute.xlu0 %945
    %vm947 = vcmp.lt.s32.totalorder %v171, 111
    %v948 = vsel %vm947, %v944, %v946
    %v949 = vsel %vm947, %v946, %v944
    %s950 = scalar_lea.vmem %s0, 64
    %v951 = vld [vmem:[%s950] ss:$8 sm:$0x3]
    %v953 = vlaneseq
    %v954 = vshrl.u32 %v953, 7
    %v955 = vsub.s32 0, %v954
    %v956 = vrot.slane %v951, %v955
    %v957 = vlaneseq
    %v958 = vshrl.u32 %v957, 7
    %v959 = vsub.s32 1, %v958
    %v960 = vrot.slane %v951, %v959
    %v963 = vmul.f32 %v948, %v956
    %v964 = vmul.f32 %v949, %v960
    %v965 = vadd.f32 %v941, %v963
    %v966 = vadd.f32 %v942, %v964
    %967 = vrot.lane.b32.xlu0 %v162, 110
    %v968 = vpop.permute.xlu0 %967
    %969 = vrot.lane.b32.xlu0 %v163, 110
    %v970 = vpop.permute.xlu0 %969
    %vm971 = vcmp.lt.s32.totalorder %v171, 110
    %v972 = vsel %vm971, %v968, %v970
    %v973 = vsel %vm971, %v970, %v968
    %s974 = scalar_lea.vmem %s0, 65
    %v975 = vld [vmem:[%s974] ss:$8 sm:$0x3]
    %v977 = vlaneseq
    %v978 = vshrl.u32 %v977, 7
    %v979 = vsub.s32 0, %v978
    %v980 = vrot.slane %v975, %v979
    %v981 = vlaneseq
    %v982 = vshrl.u32 %v981, 7
    %v983 = vsub.s32 1, %v982
    %v984 = vrot.slane %v975, %v983
    %v987 = vmul.f32 %v972, %v980
    %v988 = vmul.f32 %v973, %v984
    %v989 = vadd.f32 %v965, %v987
    %v990 = vadd.f32 %v966, %v988
    %991 = vrot.lane.b32.xlu0 %v162, 109
    %v992 = vpop.permute.xlu0 %991
    %993 = vrot.lane.b32.xlu0 %v163, 109
    %v994 = vpop.permute.xlu0 %993
    %vm995 = vcmp.lt.s32.totalorder %v171, 109
    %v996 = vsel %vm995, %v992, %v994
    %v997 = vsel %vm995, %v994, %v992
    %s998 = scalar_lea.vmem %s0, 66
    %v999 = vld [vmem:[%s998] ss:$8 sm:$0x3]
    %v1001 = vlaneseq
    %v1002 = vshrl.u32 %v1001, 7
    %v1003 = vsub.s32 0, %v1002
    %v1004 = vrot.slane %v999, %v1003
    %v1005 = vlaneseq
    %v1006 = vshrl.u32 %v1005, 7
    %v1007 = vsub.s32 1, %v1006
    %v1008 = vrot.slane %v999, %v1007
    %v1011 = vmul.f32 %v996, %v1004
    %v1012 = vmul.f32 %v997, %v1008
    %v1013 = vadd.f32 %v989, %v1011
    %v1014 = vadd.f32 %v990, %v1012
    %1015 = vrot.lane.b32.xlu0 %v162, 99
    %v1016 = vpop.permute.xlu0 %1015
    %1017 = vrot.lane.b32.xlu0 %v163, 99
    %v1018 = vpop.permute.xlu0 %1017
    %vm1019 = vcmp.lt.s32.totalorder %v171, 99
    %v1020 = vsel %vm1019, %v1016, %v1018
    %v1021 = vsel %vm1019, %v1018, %v1016
    %s1022 = scalar_lea.vmem %s0, 67
    %v1023 = vld [vmem:[%s1022] ss:$8 sm:$0x3]
    %v1025 = vlaneseq
    %v1026 = vshrl.u32 %v1025, 7
    %v1027 = vsub.s32 0, %v1026
    %v1028 = vrot.slane %v1023, %v1027
    %v1029 = vlaneseq
    %v1030 = vshrl.u32 %v1029, 7
    %v1031 = vsub.s32 1, %v1030
    %v1032 = vrot.slane %v1023, %v1031
    %v1035 = vmul.f32 %v1020, %v1028
    %v1036 = vmul.f32 %v1021, %v1032
    %v1037 = vadd.f32 %v1013, %v1035
    %v1038 = vadd.f32 %v1014, %v1036
    %1039 = vrot.lane.b32.xlu0 %v162, 98
    %v1040 = vpop.permute.xlu0 %1039
    %1041 = vrot.lane.b32.xlu0 %v163, 98
    %v1042 = vpop.permute.xlu0 %1041
    %vm1043 = vcmp.lt.s32.totalorder %v171, 98
    %v1044 = vsel %vm1043, %v1040, %v1042
    %v1045 = vsel %vm1043, %v1042, %v1040
    %s1046 = scalar_lea.vmem %s0, 68
    %v1047 = vld [vmem:[%s1046] ss:$8 sm:$0x3]
    %v1049 = vlaneseq
    %v1050 = vshrl.u32 %v1049, 7
    %v1051 = vsub.s32 0, %v1050
    %v1052 = vrot.slane %v1047, %v1051
    %v1053 = vlaneseq
    %v1054 = vshrl.u32 %v1053, 7
    %v1055 = vsub.s32 1, %v1054
    %v1056 = vrot.slane %v1047, %v1055
    %v1059 = vmul.f32 %v1044, %v1052
    %v1060 = vmul.f32 %v1045, %v1056
    %v1061 = vadd.f32 %v1037, %v1059
    %v1062 = vadd.f32 %v1038, %v1060
    %1063 = vrot.lane.b32.xlu0 %v162, 97
    %v1064 = vpop.permute.xlu0 %1063
    %1065 = vrot.lane.b32.xlu0 %v163, 97
    %v1066 = vpop.permute.xlu0 %1065
    %vm1067 = vcmp.lt.s32.totalorder %v171, 97
    %v1068 = vsel %vm1067, %v1064, %v1066
    %v1069 = vsel %vm1067, %v1066, %v1064
    %s1070 = scalar_lea.vmem %s0, 69
    %v1071 = vld [vmem:[%s1070] ss:$8 sm:$0x3]
    %v1073 = vlaneseq
    %v1074 = vshrl.u32 %v1073, 7
    %v1075 = vsub.s32 0, %v1074
    %v1076 = vrot.slane %v1071, %v1075
    %v1077 = vlaneseq
    %v1078 = vshrl.u32 %v1077, 7
    %v1079 = vsub.s32 1, %v1078
    %v1080 = vrot.slane %v1071, %v1079
    %v1083 = vmul.f32 %v1068, %v1076
    %v1084 = vmul.f32 %v1069, %v1080
    %v1085 = vadd.f32 %v1061, %v1083
    %v1086 = vadd.f32 %v1062, %v1084
    %1087 = vrot.lane.b32.xlu0 %v162, 96
    %v1088 = vpop.permute.xlu0 %1087
    %1089 = vrot.lane.b32.xlu0 %v163, 96
    %v1090 = vpop.permute.xlu0 %1089
    %vm1091 = vcmp.lt.s32.totalorder %v171, 96
    %v1092 = vsel %vm1091, %v1088, %v1090
    %v1093 = vsel %vm1091, %v1090, %v1088
    %s1094 = scalar_lea.vmem %s0, 70
    %v1095 = vld [vmem:[%s1094] ss:$8 sm:$0x3]
    %v1097 = vlaneseq
    %v1098 = vshrl.u32 %v1097, 7
    %v1099 = vsub.s32 0, %v1098
    %v1100 = vrot.slane %v1095, %v1099
    %v1101 = vlaneseq
    %v1102 = vshrl.u32 %v1101, 7
    %v1103 = vsub.s32 1, %v1102
    %v1104 = vrot.slane %v1095, %v1103
    %v1107 = vmul.f32 %v1092, %v1100
    %v1108 = vmul.f32 %v1093, %v1104
    %v1109 = vadd.f32 %v1085, %v1107
    %v1110 = vadd.f32 %v1086, %v1108
    %1111 = vrot.lane.b32.xlu0 %v162, 95
    %v1112 = vpop.permute.xlu0 %1111
    %1113 = vrot.lane.b32.xlu0 %v163, 95
    %v1114 = vpop.permute.xlu0 %1113
    %vm1115 = vcmp.lt.s32.totalorder %v171, 95
    %v1116 = vsel %vm1115, %v1112, %v1114
    %v1117 = vsel %vm1115, %v1114, %v1112
    %s1118 = scalar_lea.vmem %s0, 71
    %v1119 = vld [vmem:[%s1118] ss:$8 sm:$0x3]
    %v1121 = vlaneseq
    %v1122 = vshrl.u32 %v1121, 7
    %v1123 = vsub.s32 0, %v1122
    %v1124 = vrot.slane %v1119, %v1123
    %v1125 = vlaneseq
    %v1126 = vshrl.u32 %v1125, 7
    %v1127 = vsub.s32 1, %v1126
    %v1128 = vrot.slane %v1119, %v1127
    %v1131 = vmul.f32 %v1116, %v1124
    %v1132 = vmul.f32 %v1117, %v1128
    %v1133 = vadd.f32 %v1109, %v1131
    %v1134 = vadd.f32 %v1110, %v1132
    %1135 = vrot.lane.b32.xlu0 %v162, 94
    %v1136 = vpop.permute.xlu0 %1135
    %1137 = vrot.lane.b32.xlu0 %v163, 94
    %v1138 = vpop.permute.xlu0 %1137
    %vm1139 = vcmp.lt.s32.totalorder %v171, 94
    %v1140 = vsel %vm1139, %v1136, %v1138
    %v1141 = vsel %vm1139, %v1138, %v1136
    %s1142 = scalar_lea.vmem %s0, 80
    %v1143 = vld [vmem:[%s1142] ss:$8 sm:$0x3]
    %v1145 = vlaneseq
    %v1146 = vshrl.u32 %v1145, 7
    %v1147 = vsub.s32 0, %v1146
    %v1148 = vrot.slane %v1143, %v1147
    %v1149 = vlaneseq
    %v1150 = vshrl.u32 %v1149, 7
    %v1151 = vsub.s32 1, %v1150
    %v1152 = vrot.slane %v1143, %v1151
    %v1155 = vmul.f32 %v1140, %v1148
    %v1156 = vmul.f32 %v1141, %v1152
    %v1157 = vadd.f32 %v1133, %v1155
    %v1158 = vadd.f32 %v1134, %v1156
    %1159 = vrot.lane.b32.xlu0 %v162, 93
    %v1160 = vpop.permute.xlu0 %1159
    %1161 = vrot.lane.b32.xlu0 %v163, 93
    %v1162 = vpop.permute.xlu0 %1161
    %vm1163 = vcmp.lt.s32.totalorder %v171, 93
    %v1164 = vsel %vm1163, %v1160, %v1162
    %v1165 = vsel %vm1163, %v1162, %v1160
    %s1166 = scalar_lea.vmem %s0, 81
    %v1167 = vld [vmem:[%s1166] ss:$8 sm:$0x3]
    %v1169 = vlaneseq
    %v1170 = vshrl.u32 %v1169, 7
    %v1171 = vsub.s32 0, %v1170
    %v1172 = vrot.slane %v1167, %v1171
    %v1173 = vlaneseq
    %v1174 = vshrl.u32 %v1173, 7
    %v1175 = vsub.s32 1, %v1174
    %v1176 = vrot.slane %v1167, %v1175
    %v1179 = vmul.f32 %v1164, %v1172
    %v1180 = vmul.f32 %v1165, %v1176
    %v1181 = vadd.f32 %v1157, %v1179
    %v1182 = vadd.f32 %v1158, %v1180
    %1183 = vrot.lane.b32.xlu0 %v162, 83
    %v1184 = vpop.permute.xlu0 %1183
    %1185 = vrot.lane.b32.xlu0 %v163, 83
    %v1186 = vpop.permute.xlu0 %1185
    %vm1187 = vcmp.lt.s32.totalorder %v171, 83
    %v1188 = vsel %vm1187, %v1184, %v1186
    %v1189 = vsel %vm1187, %v1186, %v1184
    %s1190 = scalar_lea.vmem %s0, 82
    %v1191 = vld [vmem:[%s1190] ss:$8 sm:$0x3]
    %v1193 = vlaneseq
    %v1194 = vshrl.u32 %v1193, 7
    %v1195 = vsub.s32 0, %v1194
    %v1196 = vrot.slane %v1191, %v1195
    %v1197 = vlaneseq
    %v1198 = vshrl.u32 %v1197, 7
    %v1199 = vsub.s32 1, %v1198
    %v1200 = vrot.slane %v1191, %v1199
    %v1203 = vmul.f32 %v1188, %v1196
    %v1204 = vmul.f32 %v1189, %v1200
    %v1205 = vadd.f32 %v1181, %v1203
    %v1206 = vadd.f32 %v1182, %v1204
    %1207 = vrot.lane.b32.xlu0 %v162, 82
    %v1208 = vpop.permute.xlu0 %1207
    %1209 = vrot.lane.b32.xlu0 %v163, 82
    %v1210 = vpop.permute.xlu0 %1209
    %vm1211 = vcmp.lt.s32.totalorder %v171, 82
    %v1212 = vsel %vm1211, %v1208, %v1210
    %v1213 = vsel %vm1211, %v1210, %v1208
    %s1214 = scalar_lea.vmem %s0, 83
    %v1215 = vld [vmem:[%s1214] ss:$8 sm:$0x3]
    %v1217 = vlaneseq
    %v1218 = vshrl.u32 %v1217, 7
    %v1219 = vsub.s32 0, %v1218
    %v1220 = vrot.slane %v1215, %v1219
    %v1221 = vlaneseq
    %v1222 = vshrl.u32 %v1221, 7
    %v1223 = vsub.s32 1, %v1222
    %v1224 = vrot.slane %v1215, %v1223
    %v1227 = vmul.f32 %v1212, %v1220
    %v1228 = vmul.f32 %v1213, %v1224
    %v1229 = vadd.f32 %v1205, %v1227
    %v1230 = vadd.f32 %v1206, %v1228
    %1231 = vrot.lane.b32.xlu0 %v162, 81
    %v1232 = vpop.permute.xlu0 %1231
    %1233 = vrot.lane.b32.xlu0 %v163, 81
    %v1234 = vpop.permute.xlu0 %1233
    %vm1235 = vcmp.lt.s32.totalorder %v171, 81
    %v1236 = vsel %vm1235, %v1232, %v1234
    %v1237 = vsel %vm1235, %v1234, %v1232
    %s1238 = scalar_lea.vmem %s0, 84
    %v1239 = vld [vmem:[%s1238] ss:$8 sm:$0x3]
    %v1241 = vlaneseq
    %v1242 = vshrl.u32 %v1241, 7
    %v1243 = vsub.s32 0, %v1242
    %v1244 = vrot.slane %v1239, %v1243
    %v1245 = vlaneseq
    %v1246 = vshrl.u32 %v1245, 7
    %v1247 = vsub.s32 1, %v1246
    %v1248 = vrot.slane %v1239, %v1247
    %v1251 = vmul.f32 %v1236, %v1244
    %v1252 = vmul.f32 %v1237, %v1248
    %v1253 = vadd.f32 %v1229, %v1251
    %v1254 = vadd.f32 %v1230, %v1252
    %1255 = vrot.lane.b32.xlu0 %v162, 80
    %v1256 = vpop.permute.xlu0 %1255
    %1257 = vrot.lane.b32.xlu0 %v163, 80
    %v1258 = vpop.permute.xlu0 %1257
    %vm1259 = vcmp.lt.s32.totalorder %v171, 80
    %v1260 = vsel %vm1259, %v1256, %v1258
    %v1261 = vsel %vm1259, %v1258, %v1256
    %s1262 = scalar_lea.vmem %s0, 85
    %v1263 = vld [vmem:[%s1262] ss:$8 sm:$0x3]
    %v1265 = vlaneseq
    %v1266 = vshrl.u32 %v1265, 7
    %v1267 = vsub.s32 0, %v1266
    %v1268 = vrot.slane %v1263, %v1267
    %v1269 = vlaneseq
    %v1270 = vshrl.u32 %v1269, 7
    %v1271 = vsub.s32 1, %v1270
    %v1272 = vrot.slane %v1263, %v1271
    %v1275 = vmul.f32 %v1260, %v1268
    %v1276 = vmul.f32 %v1261, %v1272
    %v1277 = vadd.f32 %v1253, %v1275
    %v1278 = vadd.f32 %v1254, %v1276
    %1279 = vrot.lane.b32.xlu0 %v162, 79
    %v1280 = vpop.permute.xlu0 %1279
    %1281 = vrot.lane.b32.xlu0 %v163, 79
    %v1282 = vpop.permute.xlu0 %1281
    %vm1283 = vcmp.lt.s32.totalorder %v171, 79
    %v1284 = vsel %vm1283, %v1280, %v1282
    %v1285 = vsel %vm1283, %v1282, %v1280
    %s1286 = scalar_lea.vmem %s0, 86
    %v1287 = vld [vmem:[%s1286] ss:$8 sm:$0x3]
    %v1289 = vlaneseq
    %v1290 = vshrl.u32 %v1289, 7
    %v1291 = vsub.s32 0, %v1290
    %v1292 = vrot.slane %v1287, %v1291
    %v1293 = vlaneseq
    %v1294 = vshrl.u32 %v1293, 7
    %v1295 = vsub.s32 1, %v1294
    %v1296 = vrot.slane %v1287, %v1295
    %v1299 = vmul.f32 %v1284, %v1292
    %v1300 = vmul.f32 %v1285, %v1296
    %v1301 = vadd.f32 %v1277, %v1299
    %v1302 = vadd.f32 %v1278, %v1300
    %1303 = vrot.lane.b32.xlu0 %v162, 78
    %v1304 = vpop.permute.xlu0 %1303
    %1305 = vrot.lane.b32.xlu0 %v163, 78
    %v1306 = vpop.permute.xlu0 %1305
    %vm1307 = vcmp.lt.s32.totalorder %v171, 78
    %v1308 = vsel %vm1307, %v1304, %v1306
    %v1309 = vsel %vm1307, %v1306, %v1304
    %s1310 = scalar_lea.vmem %s0, 87
    %v1311 = vld [vmem:[%s1310] ss:$8 sm:$0x3]
    %v1313 = vlaneseq
    %v1314 = vshrl.u32 %v1313, 7
    %v1315 = vsub.s32 0, %v1314
    %v1316 = vrot.slane %v1311, %v1315
    %v1317 = vlaneseq
    %v1318 = vshrl.u32 %v1317, 7
    %v1319 = vsub.s32 1, %v1318
    %v1320 = vrot.slane %v1311, %v1319
    %v1323 = vmul.f32 %v1308, %v1316
    %v1324 = vmul.f32 %v1309, %v1320
    %v1325 = vadd.f32 %v1301, %v1323
    %v1326 = vadd.f32 %v1302, %v1324
    %1327 = vrot.lane.b32.xlu0 %v162, 77
    %v1328 = vpop.permute.xlu0 %1327
    %1329 = vrot.lane.b32.xlu0 %v163, 77
    %v1330 = vpop.permute.xlu0 %1329
    %vm1331 = vcmp.lt.s32.totalorder %v171, 77
    %v1332 = vsel %vm1331, %v1328, %v1330
    %v1333 = vsel %vm1331, %v1330, %v1328
    %s1334 = scalar_lea.vmem %s0, 96
    %v1335 = vld [vmem:[%s1334] ss:$8 sm:$0x3]
    %v1337 = vlaneseq
    %v1338 = vshrl.u32 %v1337, 7
    %v1339 = vsub.s32 0, %v1338
    %v1340 = vrot.slane %v1335, %v1339
    %v1341 = vlaneseq
    %v1342 = vshrl.u32 %v1341, 7
    %v1343 = vsub.s32 1, %v1342
    %v1344 = vrot.slane %v1335, %v1343
    %v1347 = vmul.f32 %v1332, %v1340
    %v1348 = vmul.f32 %v1333, %v1344
    %v1349 = vadd.f32 %v1325, %v1347
    %v1350 = vadd.f32 %v1326, %v1348
    %v1353 = vunpack.c.l.s4 1983009808
    %v1354 = vunpack.c.0.s8 %v1353
    %v1355 = vlaneseq
    %v1356 = vshrl.u32 %v1355, 7
    %v1357 = vsub.s32 %v1354, %v1356
    %v1358 = vrot.slane %v154, %v1357
    %v1359 = vcombine.high %v1358, %v1358
    %1362 = vrot.lane.b32.xlu0 %v1358, 51
    %v1363 = vpop.permute.xlu0 %1362
    %1364 = vrot.lane.b32.xlu0 %v1359, 51
    %v1365 = vpop.permute.xlu0 %1364
    %v1366 = vsel %vm172, %v1363, %v1365
    %v1367 = vsel %vm172, %v1365, %v1363
    %s1368 = scalar_lea.vmem %s0, 97
    %v1369 = vld [vmem:[%s1368] ss:$8 sm:$0x3]
    %v1371 = vlaneseq
    %v1372 = vshrl.u32 %v1371, 7
    %v1373 = vsub.s32 0, %v1372
    %v1374 = vrot.slane %v1369, %v1373
    %v1375 = vlaneseq
    %v1376 = vshrl.u32 %v1375, 7
    %v1377 = vsub.s32 1, %v1376
    %v1378 = vrot.slane %v1369, %v1377
    %v1381 = vmul.f32 %v1367, %v1374
    %v1382 = vmul.f32 %v1366, %v1378
    %v1383 = vadd.f32 %v1349, %v1381
    %v1384 = vadd.f32 %v1350, %v1382
    %1385 = vrot.lane.b32.xlu0 %v1358, 50
    %v1386 = vpop.permute.xlu0 %1385
    %1387 = vrot.lane.b32.xlu0 %v1359, 50
    %v1388 = vpop.permute.xlu0 %1387
    %v1389 = vsel %vm193, %v1386, %v1388
    %v1390 = vsel %vm193, %v1388, %v1386
    %s1391 = scalar_lea.vmem %s0, 98
    %v1392 = vld [vmem:[%s1391] ss:$8 sm:$0x3]
    %v1394 = vlaneseq
    %v1395 = vshrl.u32 %v1394, 7
    %v1396 = vsub.s32 0, %v1395
    %v1397 = vrot.slane %v1392, %v1396
    %v1398 = vlaneseq
    %v1399 = vshrl.u32 %v1398, 7
    %v1400 = vsub.s32 1, %v1399
    %v1401 = vrot.slane %v1392, %v1400
    %v1404 = vmul.f32 %v1390, %v1397
    %v1405 = vmul.f32 %v1389, %v1401
    %v1406 = vadd.f32 %v1383, %v1404
    %v1407 = vadd.f32 %v1384, %v1405
    %1408 = vrot.lane.b32.xlu0 %v1358, 49
    %v1409 = vpop.permute.xlu0 %1408
    %1410 = vrot.lane.b32.xlu0 %v1359, 49
    %v1411 = vpop.permute.xlu0 %1410
    %v1412 = vsel %vm217, %v1409, %v1411
    %v1413 = vsel %vm217, %v1411, %v1409
    %s1414 = scalar_lea.vmem %s0, 99
    %v1415 = vld [vmem:[%s1414] ss:$8 sm:$0x3]
    %v1417 = vlaneseq
    %v1418 = vshrl.u32 %v1417, 7
    %v1419 = vsub.s32 0, %v1418
    %v1420 = vrot.slane %v1415, %v1419
    %v1421 = vlaneseq
    %v1422 = vshrl.u32 %v1421, 7
    %v1423 = vsub.s32 1, %v1422
    %v1424 = vrot.slane %v1415, %v1423
    %v1427 = vmul.f32 %v1413, %v1420
    %v1428 = vmul.f32 %v1412, %v1424
    %v1429 = vadd.f32 %v1406, %v1427
    %v1430 = vadd.f32 %v1407, %v1428
    %1431 = vrot.lane.b32.xlu0 %v1358, 48
    %v1432 = vpop.permute.xlu0 %1431
    %1433 = vrot.lane.b32.xlu0 %v1359, 48
    %v1434 = vpop.permute.xlu0 %1433
    %v1435 = vsel %vm241, %v1432, %v1434
    %v1436 = vsel %vm241, %v1434, %v1432
    %s1437 = scalar_lea.vmem %s0, 100
    %v1438 = vld [vmem:[%s1437] ss:$8 sm:$0x3]
    %v1440 = vlaneseq
    %v1441 = vshrl.u32 %v1440, 7
    %v1442 = vsub.s32 0, %v1441
    %v1443 = vrot.slane %v1438, %v1442
    %v1444 = vlaneseq
    %v1445 = vshrl.u32 %v1444, 7
    %v1446 = vsub.s32 1, %v1445
    %v1447 = vrot.slane %v1438, %v1446
    %v1450 = vmul.f32 %v1436, %v1443
    %v1451 = vmul.f32 %v1435, %v1447
    %v1452 = vadd.f32 %v1429, %v1450
    %v1453 = vadd.f32 %v1430, %v1451
    %1454 = vrot.lane.b32.xlu0 %v1358, 47
    %v1455 = vpop.permute.xlu0 %1454
    %1456 = vrot.lane.b32.xlu0 %v1359, 47
    %v1457 = vpop.permute.xlu0 %1456
    %v1458 = vsel %vm265, %v1455, %v1457
    %v1459 = vsel %vm265, %v1457, %v1455
    %s1460 = scalar_lea.vmem %s0, 101
    %v1461 = vld [vmem:[%s1460] ss:$8 sm:$0x3]
    %v1463 = vlaneseq
    %v1464 = vshrl.u32 %v1463, 7
    %v1465 = vsub.s32 0, %v1464
    %v1466 = vrot.slane %v1461, %v1465
    %v1467 = vlaneseq
    %v1468 = vshrl.u32 %v1467, 7
    %v1469 = vsub.s32 1, %v1468
    %v1470 = vrot.slane %v1461, %v1469
    %v1473 = vmul.f32 %v1459, %v1466
    %v1474 = vmul.f32 %v1458, %v1470
    %v1475 = vadd.f32 %v1452, %v1473
    %v1476 = vadd.f32 %v1453, %v1474
    %1477 = vrot.lane.b32.xlu0 %v1358, 46
    %v1478 = vpop.permute.xlu0 %1477
    %1479 = vrot.lane.b32.xlu0 %v1359, 46
    %v1480 = vpop.permute.xlu0 %1479
    %v1481 = vsel %vm289, %v1478, %v1480
    %v1482 = vsel %vm289, %v1480, %v1478
    %s1483 = scalar_lea.vmem %s0, 102
    %v1484 = vld [vmem:[%s1483] ss:$8 sm:$0x3]
    %v1486 = vlaneseq
    %v1487 = vshrl.u32 %v1486, 7
    %v1488 = vsub.s32 0, %v1487
    %v1489 = vrot.slane %v1484, %v1488
    %v1490 = vlaneseq
    %v1491 = vshrl.u32 %v1490, 7
    %v1492 = vsub.s32 1, %v1491
    %v1493 = vrot.slane %v1484, %v1492
    %v1496 = vmul.f32 %v1482, %v1489
    %v1497 = vmul.f32 %v1481, %v1493
    %v1498 = vadd.f32 %v1475, %v1496
    %v1499 = vadd.f32 %v1476, %v1497
    %1500 = vrot.lane.b32.xlu0 %v1358, 45
    %v1501 = vpop.permute.xlu0 %1500
    %1502 = vrot.lane.b32.xlu0 %v1359, 45
    %v1503 = vpop.permute.xlu0 %1502
    %v1504 = vsel %vm313, %v1501, %v1503
    %v1505 = vsel %vm313, %v1503, %v1501
    %s1506 = scalar_lea.vmem %s0, 103
    %v1507 = vld [vmem:[%s1506] ss:$8 sm:$0x3]
    %v1509 = vlaneseq
    %v1510 = vshrl.u32 %v1509, 7
    %v1511 = vsub.s32 0, %v1510
    %v1512 = vrot.slane %v1507, %v1511
    %v1513 = vlaneseq
    %v1514 = vshrl.u32 %v1513, 7
    %v1515 = vsub.s32 1, %v1514
    %v1516 = vrot.slane %v1507, %v1515
    %v1519 = vmul.f32 %v1505, %v1512
    %v1520 = vmul.f32 %v1504, %v1516
    %v1521 = vadd.f32 %v1498, %v1519
    %v1522 = vadd.f32 %v1499, %v1520
    %1523 = vrot.lane.b32.xlu0 %v1358, 35
    %v1524 = vpop.permute.xlu0 %1523
    %1525 = vrot.lane.b32.xlu0 %v1359, 35
    %v1526 = vpop.permute.xlu0 %1525
    %v1527 = vsel %vm337, %v1524, %v1526
    %v1528 = vsel %vm337, %v1526, %v1524
    %s1529 = scalar_lea.vmem %s0, 112
    %v1530 = vld [vmem:[%s1529] ss:$8 sm:$0x3]
    %v1532 = vlaneseq
    %v1533 = vshrl.u32 %v1532, 7
    %v1534 = vsub.s32 0, %v1533
    %v1535 = vrot.slane %v1530, %v1534
    %v1536 = vlaneseq
    %v1537 = vshrl.u32 %v1536, 7
    %v1538 = vsub.s32 1, %v1537
    %v1539 = vrot.slane %v1530, %v1538
    %v1542 = vmul.f32 %v1528, %v1535
    %v1543 = vmul.f32 %v1527, %v1539
    %v1544 = vadd.f32 %v1521, %v1542
    %v1545 = vadd.f32 %v1522, %v1543
    %1546 = vrot.lane.b32.xlu0 %v1358, 34
    %v1547 = vpop.permute.xlu0 %1546
    %1548 = vrot.lane.b32.xlu0 %v1359, 34
    %v1549 = vpop.permute.xlu0 %1548
    %v1550 = vsel %vm361, %v1547, %v1549
    %v1551 = vsel %vm361, %v1549, %v1547
    %s1552 = scalar_lea.vmem %s0, 113
    %v1553 = vld [vmem:[%s1552] ss:$8 sm:$0x3]
    %v1555 = vlaneseq
    %v1556 = vshrl.u32 %v1555, 7
    %v1557 = vsub.s32 0, %v1556
    %v1558 = vrot.slane %v1553, %v1557
    %v1559 = vlaneseq
    %v1560 = vshrl.u32 %v1559, 7
    %v1561 = vsub.s32 1, %v1560
    %v1562 = vrot.slane %v1553, %v1561
    %v1565 = vmul.f32 %v1551, %v1558
    %v1566 = vmul.f32 %v1550, %v1562
    %v1567 = vadd.f32 %v1544, %v1565
    %v1568 = vadd.f32 %v1545, %v1566
    %1569 = vrot.lane.b32.xlu0 %v1358, 33
    %v1570 = vpop.permute.xlu0 %1569
    %1571 = vrot.lane.b32.xlu0 %v1359, 33
    %v1572 = vpop.permute.xlu0 %1571
    %v1573 = vsel %vm385, %v1570, %v1572
    %v1574 = vsel %vm385, %v1572, %v1570
    %s1575 = scalar_lea.vmem %s0, 114
    %v1576 = vld [vmem:[%s1575] ss:$8 sm:$0x3]
    %v1578 = vlaneseq
    %v1579 = vshrl.u32 %v1578, 7
    %v1580 = vsub.s32 0, %v1579
    %v1581 = vrot.slane %v1576, %v1580
    %v1582 = vlaneseq
    %v1583 = vshrl.u32 %v1582, 7
    %v1584 = vsub.s32 1, %v1583
    %v1585 = vrot.slane %v1576, %v1584
    %v1588 = vmul.f32 %v1574, %v1581
    %v1589 = vmul.f32 %v1573, %v1585
    %v1590 = vadd.f32 %v1567, %v1588
    %v1591 = vadd.f32 %v1568, %v1589
    %1592 = vrot.lane.b32.xlu0 %v1358, 32
    %v1593 = vpop.permute.xlu0 %1592
    %1594 = vrot.lane.b32.xlu0 %v1359, 32
    %v1595 = vpop.permute.xlu0 %1594
    %v1596 = vsel %vm409, %v1593, %v1595
    %v1597 = vsel %vm409, %v1595, %v1593
    %s1598 = scalar_lea.vmem %s0, 115
    %v1599 = vld [vmem:[%s1598] ss:$8 sm:$0x3]
    %v1601 = vlaneseq
    %v1602 = vshrl.u32 %v1601, 7
    %v1603 = vsub.s32 0, %v1602
    %v1604 = vrot.slane %v1599, %v1603
    %v1605 = vlaneseq
    %v1606 = vshrl.u32 %v1605, 7
    %v1607 = vsub.s32 1, %v1606
    %v1608 = vrot.slane %v1599, %v1607
    %v1611 = vmul.f32 %v1597, %v1604
    %v1612 = vmul.f32 %v1596, %v1608
    %v1613 = vadd.f32 %v1590, %v1611
    %v1614 = vadd.f32 %v1591, %v1612
    %1615 = vrot.lane.b32.xlu0 %v1358, 31
    %v1616 = vpop.permute.xlu0 %1615
    %1617 = vrot.lane.b32.xlu0 %v1359, 31
    %v1618 = vpop.permute.xlu0 %1617
    %v1619 = vsel %vm433, %v1616, %v1618
    %v1620 = vsel %vm433, %v1618, %v1616
    %s1621 = scalar_lea.vmem %s0, 116
    %v1622 = vld [vmem:[%s1621] ss:$8 sm:$0x3]
    %v1624 = vlaneseq
    %v1625 = vshrl.u32 %v1624, 7
    %v1626 = vsub.s32 0, %v1625
    %v1627 = vrot.slane %v1622, %v1626
    %v1628 = vlaneseq
    %v1629 = vshrl.u32 %v1628, 7
    %v1630 = vsub.s32 1, %v1629
    %v1631 = vrot.slane %v1622, %v1630
    %v1634 = vmul.f32 %v1620, %v1627
    %v1635 = vmul.f32 %v1619, %v1631
    %v1636 = vadd.f32 %v1613, %v1634
    %v1637 = vadd.f32 %v1614, %v1635
    %1638 = vrot.lane.b32.xlu0 %v1358, 30
    %v1639 = vpop.permute.xlu0 %1638
    %1640 = vrot.lane.b32.xlu0 %v1359, 30
    %v1641 = vpop.permute.xlu0 %1640
    %v1642 = vsel %vm457, %v1639, %v1641
    %v1643 = vsel %vm457, %v1641, %v1639
    %s1644 = scalar_lea.vmem %s0, 117
    %v1645 = vld [vmem:[%s1644] ss:$8 sm:$0x3]
    %v1647 = vlaneseq
    %v1648 = vshrl.u32 %v1647, 7
    %v1649 = vsub.s32 0, %v1648
    %v1650 = vrot.slane %v1645, %v1649
    %v1651 = vlaneseq
    %v1652 = vshrl.u32 %v1651, 7
    %v1653 = vsub.s32 1, %v1652
    %v1654 = vrot.slane %v1645, %v1653
    %v1657 = vmul.f32 %v1643, %v1650
    %v1658 = vmul.f32 %v1642, %v1654
    %v1659 = vadd.f32 %v1636, %v1657
    %v1660 = vadd.f32 %v1637, %v1658
    %1661 = vrot.lane.b32.xlu0 %v1358, 29
    %v1662 = vpop.permute.xlu0 %1661
    %1663 = vrot.lane.b32.xlu0 %v1359, 29
    %v1664 = vpop.permute.xlu0 %1663
    %v1665 = vsel %vm481, %v1662, %v1664
    %v1666 = vsel %vm481, %v1664, %v1662
    %s1667 = scalar_lea.vmem %s0, 118
    %v1668 = vld [vmem:[%s1667] ss:$8 sm:$0x3]
    %v1670 = vlaneseq
    %v1671 = vshrl.u32 %v1670, 7
    %v1672 = vsub.s32 0, %v1671
    %v1673 = vrot.slane %v1668, %v1672
    %v1674 = vlaneseq
    %v1675 = vshrl.u32 %v1674, 7
    %v1676 = vsub.s32 1, %v1675
    %v1677 = vrot.slane %v1668, %v1676
    %v1680 = vmul.f32 %v1666, %v1673
    %v1681 = vmul.f32 %v1665, %v1677
    %v1682 = vadd.f32 %v1659, %v1680
    %v1683 = vadd.f32 %v1660, %v1681
    %1684 = vrot.lane.b32.xlu0 %v1358, 19
    %v1685 = vpop.permute.xlu0 %1684
    %1686 = vrot.lane.b32.xlu0 %v1359, 19
    %v1687 = vpop.permute.xlu0 %1686
    %v1688 = vsel %vm505, %v1685, %v1687
    %v1689 = vsel %vm505, %v1687, %v1685
    %s1690 = scalar_lea.vmem %s0, 119
    %v1691 = vld [vmem:[%s1690] ss:$8 sm:$0x3]
    %v1693 = vlaneseq
    %v1694 = vshrl.u32 %v1693, 7
    %v1695 = vsub.s32 0, %v1694
    %v1696 = vrot.slane %v1691, %v1695
    %v1697 = vlaneseq
    %v1698 = vshrl.u32 %v1697, 7
    %v1699 = vsub.s32 1, %v1698
    %v1700 = vrot.slane %v1691, %v1699
    %v1703 = vmul.f32 %v1689, %v1696
    %v1704 = vmul.f32 %v1688, %v1700
    %v1705 = vadd.f32 %v1682, %v1703
    %v1706 = vadd.f32 %v1683, %v1704
    %1707 = vrot.lane.b32.xlu0 %v1358, 18
    %v1708 = vpop.permute.xlu0 %1707
    %1709 = vrot.lane.b32.xlu0 %v1359, 18
    %v1710 = vpop.permute.xlu0 %1709
    %v1711 = vsel %vm529, %v1708, %v1710
    %v1712 = vsel %vm529, %v1710, %v1708
    %s1713 = scalar_lea.vmem %s0, 128
    %v1714 = vld [vmem:[%s1713] ss:$8 sm:$0x3]
    %v1716 = vlaneseq
    %v1717 = vshrl.u32 %v1716, 7
    %v1718 = vsub.s32 0, %v1717
    %v1719 = vrot.slane %v1714, %v1718
    %v1720 = vlaneseq
    %v1721 = vshrl.u32 %v1720, 7
    %v1722 = vsub.s32 1, %v1721
    %v1723 = vrot.slane %v1714, %v1722
    %v1726 = vmul.f32 %v1712, %v1719
    %v1727 = vmul.f32 %v1711, %v1723
    %v1728 = vadd.f32 %v1705, %v1726
    %v1729 = vadd.f32 %v1706, %v1727
    %1730 = vrot.lane.b32.xlu0 %v1358, 17
    %v1731 = vpop.permute.xlu0 %1730
    %1732 = vrot.lane.b32.xlu0 %v1359, 17
    %v1733 = vpop.permute.xlu0 %1732
    %v1734 = vsel %vm553, %v1731, %v1733
    %v1735 = vsel %vm553, %v1733, %v1731
    %s1736 = scalar_lea.vmem %s0, 129
    %v1737 = vld [vmem:[%s1736] ss:$8 sm:$0x3]
    %v1739 = vlaneseq
    %v1740 = vshrl.u32 %v1739, 7
    %v1741 = vsub.s32 0, %v1740
    %v1742 = vrot.slane %v1737, %v1741
    %v1743 = vlaneseq
    %v1744 = vshrl.u32 %v1743, 7
    %v1745 = vsub.s32 1, %v1744
    %v1746 = vrot.slane %v1737, %v1745
    %v1749 = vmul.f32 %v1735, %v1742
    %v1750 = vmul.f32 %v1734, %v1746
    %v1751 = vadd.f32 %v1728, %v1749
    %v1752 = vadd.f32 %v1729, %v1750
    %1753 = vrot.lane.b32.xlu0 %v1358, 16
    %v1754 = vpop.permute.xlu0 %1753
    %1755 = vrot.lane.b32.xlu0 %v1359, 16
    %v1756 = vpop.permute.xlu0 %1755
    %v1757 = vsel %vm577, %v1754, %v1756
    %v1758 = vsel %vm577, %v1756, %v1754
    %s1759 = scalar_lea.vmem %s0, 130
    %v1760 = vld [vmem:[%s1759] ss:$8 sm:$0x3]
    %v1762 = vlaneseq
    %v1763 = vshrl.u32 %v1762, 7
    %v1764 = vsub.s32 0, %v1763
    %v1765 = vrot.slane %v1760, %v1764
    %v1766 = vlaneseq
    %v1767 = vshrl.u32 %v1766, 7
    %v1768 = vsub.s32 1, %v1767
    %v1769 = vrot.slane %v1760, %v1768
    %v1772 = vmul.f32 %v1758, %v1765
    %v1773 = vmul.f32 %v1757, %v1769
    %v1774 = vadd.f32 %v1751, %v1772
    %v1775 = vadd.f32 %v1752, %v1773
    %1776 = vrot.lane.b32.xlu0 %v1358, 15
    %v1777 = vpop.permute.xlu0 %1776
    %1778 = vrot.lane.b32.xlu0 %v1359, 15
    %v1779 = vpop.permute.xlu0 %1778
    %v1780 = vsel %vm601, %v1777, %v1779
    %v1781 = vsel %vm601, %v1779, %v1777
    %s1782 = scalar_lea.vmem %s0, 131
    %v1783 = vld [vmem:[%s1782] ss:$8 sm:$0x3]
    %v1785 = vlaneseq
    %v1786 = vshrl.u32 %v1785, 7
    %v1787 = vsub.s32 0, %v1786
    %v1788 = vrot.slane %v1783, %v1787
    %v1789 = vlaneseq
    %v1790 = vshrl.u32 %v1789, 7
    %v1791 = vsub.s32 1, %v1790
    %v1792 = vrot.slane %v1783, %v1791
    %v1795 = vmul.f32 %v1781, %v1788
    %v1796 = vmul.f32 %v1780, %v1792
    %v1797 = vadd.f32 %v1774, %v1795
    %v1798 = vadd.f32 %v1775, %v1796
    %1799 = vrot.lane.b32.xlu0 %v1358, 14
    %v1800 = vpop.permute.xlu0 %1799
    %1801 = vrot.lane.b32.xlu0 %v1359, 14
    %v1802 = vpop.permute.xlu0 %1801
    %v1803 = vsel %vm625, %v1800, %v1802
    %v1804 = vsel %vm625, %v1802, %v1800
    %s1805 = scalar_lea.vmem %s0, 132
    %v1806 = vld [vmem:[%s1805] ss:$8 sm:$0x3]
    %v1808 = vlaneseq
    %v1809 = vshrl.u32 %v1808, 7
    %v1810 = vsub.s32 0, %v1809
    %v1811 = vrot.slane %v1806, %v1810
    %v1812 = vlaneseq
    %v1813 = vshrl.u32 %v1812, 7
    %v1814 = vsub.s32 1, %v1813
    %v1815 = vrot.slane %v1806, %v1814
    %v1818 = vmul.f32 %v1804, %v1811
    %v1819 = vmul.f32 %v1803, %v1815
    %v1820 = vadd.f32 %v1797, %v1818
    %v1821 = vadd.f32 %v1798, %v1819
    %1822 = vrot.lane.b32.xlu0 %v1358, 13
    %v1823 = vpop.permute.xlu0 %1822
    %1824 = vrot.lane.b32.xlu0 %v1359, 13
    %v1825 = vpop.permute.xlu0 %1824
    %v1826 = vsel %vm649, %v1823, %v1825
    %v1827 = vsel %vm649, %v1825, %v1823
    %s1828 = scalar_lea.vmem %s0, 133
    %v1829 = vld [vmem:[%s1828] ss:$8 sm:$0x3]
    %v1831 = vlaneseq
    %v1832 = vshrl.u32 %v1831, 7
    %v1833 = vsub.s32 0, %v1832
    %v1834 = vrot.slane %v1829, %v1833
    %v1835 = vlaneseq
    %v1836 = vshrl.u32 %v1835, 7
    %v1837 = vsub.s32 1, %v1836
    %v1838 = vrot.slane %v1829, %v1837
    %v1841 = vmul.f32 %v1827, %v1834
    %v1842 = vmul.f32 %v1826, %v1838
    %v1843 = vadd.f32 %v1820, %v1841
    %v1844 = vadd.f32 %v1821, %v1842
    %1845 = vrot.lane.b32.xlu0 %v1358, 3
    %v1846 = vpop.permute.xlu0 %1845
    %1847 = vrot.lane.b32.xlu0 %v1359, 3
    %v1848 = vpop.permute.xlu0 %1847
    %v1849 = vsel %vm673, %v1846, %v1848
    %v1850 = vsel %vm673, %v1848, %v1846
    %s1851 = scalar_lea.vmem %s0, 134
    %v1852 = vld [vmem:[%s1851] ss:$8 sm:$0x3]
    %v1854 = vlaneseq
    %v1855 = vshrl.u32 %v1854, 7
    %v1856 = vsub.s32 0, %v1855
    %v1857 = vrot.slane %v1852, %v1856
    %v1858 = vlaneseq
    %v1859 = vshrl.u32 %v1858, 7
    %v1860 = vsub.s32 1, %v1859
    %v1861 = vrot.slane %v1852, %v1860
    %v1864 = vmul.f32 %v1850, %v1857
    %v1865 = vmul.f32 %v1849, %v1861
    %v1866 = vadd.f32 %v1843, %v1864
    %v1867 = vadd.f32 %v1844, %v1865
    %1868 = vrot.lane.b32.xlu0 %v1358, 2
    %v1869 = vpop.permute.xlu0 %1868
    %1870 = vrot.lane.b32.xlu0 %v1359, 2
    %v1871 = vpop.permute.xlu0 %1870
    %v1872 = vsel %vm697, %v1869, %v1871
    %v1873 = vsel %vm697, %v1871, %v1869
    %s1874 = scalar_lea.vmem %s0, 135
    %v1875 = vld [vmem:[%s1874] ss:$8 sm:$0x3]
    %v1877 = vlaneseq
    %v1878 = vshrl.u32 %v1877, 7
    %v1879 = vsub.s32 0, %v1878
    %v1880 = vrot.slane %v1875, %v1879
    %v1881 = vlaneseq
    %v1882 = vshrl.u32 %v1881, 7
    %v1883 = vsub.s32 1, %v1882
    %v1884 = vrot.slane %v1875, %v1883
    %v1887 = vmul.f32 %v1873, %v1880
    %v1888 = vmul.f32 %v1872, %v1884
    %v1889 = vadd.f32 %v1866, %v1887
    %v1890 = vadd.f32 %v1867, %v1888
    %1891 = vrot.lane.b32.xlu0 %v1358, 1
    %v1892 = vpop.permute.xlu0 %1891
    %1893 = vrot.lane.b32.xlu0 %v1359, 1
    %v1894 = vpop.permute.xlu0 %1893
    %v1895 = vsel %vm721, %v1892, %v1894
    %v1896 = vsel %vm721, %v1894, %v1892
    %s1897 = scalar_lea.vmem %s0, 144
    %v1898 = vld [vmem:[%s1897] ss:$8 sm:$0x3]
    %v1900 = vlaneseq
    %v1901 = vshrl.u32 %v1900, 7
    %v1902 = vsub.s32 0, %v1901
    %v1903 = vrot.slane %v1898, %v1902
    %v1904 = vlaneseq
    %v1905 = vshrl.u32 %v1904, 7
    %v1906 = vsub.s32 1, %v1905
    %v1907 = vrot.slane %v1898, %v1906
    %v1910 = vmul.f32 %v1896, %v1903
    %v1911 = vmul.f32 %v1895, %v1907
    %v1912 = vadd.f32 %v1889, %v1910
    %v1913 = vadd.f32 %v1890, %v1911
    %s1914 = scalar_lea.vmem %s0, 145
    %v1915 = vld [vmem:[%s1914] ss:$8 sm:$0x3]
    %v1917 = vlaneseq
    %v1918 = vshrl.u32 %v1917, 7
    %v1919 = vsub.s32 0, %v1918
    %v1920 = vrot.slane %v1915, %v1919
    %v1921 = vlaneseq
    %v1922 = vshrl.u32 %v1921, 7
    %v1923 = vsub.s32 1, %v1922
    %v1924 = vrot.slane %v1915, %v1923
    %v1925 = vcombine.low %v1920, %v1924
    %v1927 = vunpack.c.l.s4 1983009808
    %v1928 = vunpack.c.0.s8 %v1927
    %v1929 = vlaneseq
    %v1930 = vshrl.u32 %v1929, 7
    %v1931 = vsub.s32 %v1928, %v1930
    %v1932 = vrot.slane %v1925, %v1931
    %v1934 = vmul.f32 %v154, %v1932
    %v1937 = vunpack.c.l.s4 1983009808
    %v1938 = vunpack.c.0.s8 %v1937
    %v1939 = vlaneseq
    %v1940 = vshrl.u32 %v1939, 7
    %v1941 = vsub.s32 %v1938, %v1940
    %v1942 = vrot.slane %v1934, %v1941
    %v1943 = vcombine.high %v1942, %v1942
    %v1946 = vadd.f32 %v1912, %v1942
    %v1947 = vadd.f32 %v1913, %v1943
    %1948 = vrot.lane.b32.xlu0 %v1358, 127
    %v1949 = vpop.permute.xlu0 %1948
    %1950 = vrot.lane.b32.xlu0 %v1359, 127
    %v1951 = vpop.permute.xlu0 %1950
    %v1952 = vsel %vm779, %v1949, %v1951
    %v1953 = vsel %vm779, %v1951, %v1949
    %s1954 = scalar_lea.vmem %s0, 146
    %v1955 = vld [vmem:[%s1954] ss:$8 sm:$0x3]
    %v1957 = vlaneseq
    %v1958 = vshrl.u32 %v1957, 7
    %v1959 = vsub.s32 0, %v1958
    %v1960 = vrot.slane %v1955, %v1959
    %v1961 = vlaneseq
    %v1962 = vshrl.u32 %v1961, 7
    %v1963 = vsub.s32 1, %v1962
    %v1964 = vrot.slane %v1955, %v1963
    %v1967 = vmul.f32 %v1952, %v1960
    %v1968 = vmul.f32 %v1953, %v1964
    %v1969 = vadd.f32 %v1946, %v1967
    %v1970 = vadd.f32 %v1947, %v1968
    %1971 = vrot.lane.b32.xlu0 %v1358, 126
    %v1972 = vpop.permute.xlu0 %1971
    %1973 = vrot.lane.b32.xlu0 %v1359, 126
    %v1974 = vpop.permute.xlu0 %1973
    %v1975 = vsel %vm803, %v1972, %v1974
    %v1976 = vsel %vm803, %v1974, %v1972
    %s1977 = scalar_lea.vmem %s0, 147
    %v1978 = vld [vmem:[%s1977] ss:$8 sm:$0x3]
    %v1980 = vlaneseq
    %v1981 = vshrl.u32 %v1980, 7
    %v1982 = vsub.s32 0, %v1981
    %v1983 = vrot.slane %v1978, %v1982
    %v1984 = vlaneseq
    %v1985 = vshrl.u32 %v1984, 7
    %v1986 = vsub.s32 1, %v1985
    %v1987 = vrot.slane %v1978, %v1986
    %v1990 = vmul.f32 %v1975, %v1983
    %v1991 = vmul.f32 %v1976, %v1987
    %v1992 = vadd.f32 %v1969, %v1990
    %v1993 = vadd.f32 %v1970, %v1991
    %1994 = vrot.lane.b32.xlu0 %v1358, 125
    %v1995 = vpop.permute.xlu0 %1994
    %1996 = vrot.lane.b32.xlu0 %v1359, 125
    %v1997 = vpop.permute.xlu0 %1996
    %v1998 = vsel %vm827, %v1995, %v1997
    %v1999 = vsel %vm827, %v1997, %v1995
    %s2000 = scalar_lea.vmem %s0, 148
    %v2001 = vld [vmem:[%s2000] ss:$8 sm:$0x3]
    %v2003 = vlaneseq
    %v2004 = vshrl.u32 %v2003, 7
    %v2005 = vsub.s32 0, %v2004
    %v2006 = vrot.slane %v2001, %v2005
    %v2007 = vlaneseq
    %v2008 = vshrl.u32 %v2007, 7
    %v2009 = vsub.s32 1, %v2008
    %v2010 = vrot.slane %v2001, %v2009
    %v2013 = vmul.f32 %v1998, %v2006
    %v2014 = vmul.f32 %v1999, %v2010
    %v2015 = vadd.f32 %v1992, %v2013
    %v2016 = vadd.f32 %v1993, %v2014
    %2017 = vrot.lane.b32.xlu0 %v1358, 115
    %v2018 = vpop.permute.xlu0 %2017
    %2019 = vrot.lane.b32.xlu0 %v1359, 115
    %v2020 = vpop.permute.xlu0 %2019
    %v2021 = vsel %vm851, %v2018, %v2020
    %v2022 = vsel %vm851, %v2020, %v2018
    %s2023 = scalar_lea.vmem %s0, 149
    %v2024 = vld [vmem:[%s2023] ss:$8 sm:$0x3]
    %v2026 = vlaneseq
    %v2027 = vshrl.u32 %v2026, 7
    %v2028 = vsub.s32 0, %v2027
    %v2029 = vrot.slane %v2024, %v2028
    %v2030 = vlaneseq
    %v2031 = vshrl.u32 %v2030, 7
    %v2032 = vsub.s32 1, %v2031
    %v2033 = vrot.slane %v2024, %v2032
    %v2036 = vmul.f32 %v2021, %v2029
    %v2037 = vmul.f32 %v2022, %v2033
    %v2038 = vadd.f32 %v2015, %v2036
    %v2039 = vadd.f32 %v2016, %v2037
    %2040 = vrot.lane.b32.xlu0 %v1358, 114
    %v2041 = vpop.permute.xlu0 %2040
    %2042 = vrot.lane.b32.xlu0 %v1359, 114
    %v2043 = vpop.permute.xlu0 %2042
    %v2044 = vsel %vm875, %v2041, %v2043
    %v2045 = vsel %vm875, %v2043, %v2041
    %s2046 = scalar_lea.vmem %s0, 150
    %v2047 = vld [vmem:[%s2046] ss:$8 sm:$0x3]
    %v2049 = vlaneseq
    %v2050 = vshrl.u32 %v2049, 7
    %v2051 = vsub.s32 0, %v2050
    %v2052 = vrot.slane %v2047, %v2051
    %v2053 = vlaneseq
    %v2054 = vshrl.u32 %v2053, 7
    %v2055 = vsub.s32 1, %v2054
    %v2056 = vrot.slane %v2047, %v2055
    %v2059 = vmul.f32 %v2044, %v2052
    %v2060 = vmul.f32 %v2045, %v2056
    %v2061 = vadd.f32 %v2038, %v2059
    %v2062 = vadd.f32 %v2039, %v2060
    %2063 = vrot.lane.b32.xlu0 %v1358, 113
    %v2064 = vpop.permute.xlu0 %2063
    %2065 = vrot.lane.b32.xlu0 %v1359, 113
    %v2066 = vpop.permute.xlu0 %2065
    %v2067 = vsel %vm899, %v2064, %v2066
    %v2068 = vsel %vm899, %v2066, %v2064
    %s2069 = scalar_lea.vmem %s0, 151
    %v2070 = vld [vmem:[%s2069] ss:$8 sm:$0x3]
    %v2072 = vlaneseq
    %v2073 = vshrl.u32 %v2072, 7
    %v2074 = vsub.s32 0, %v2073
    %v2075 = vrot.slane %v2070, %v2074
    %v2076 = vlaneseq
    %v2077 = vshrl.u32 %v2076, 7
    %v2078 = vsub.s32 1, %v2077
    %v2079 = vrot.slane %v2070, %v2078
    %v2082 = vmul.f32 %v2067, %v2075
    %v2083 = vmul.f32 %v2068, %v2079
    %v2084 = vadd.f32 %v2061, %v2082
    %v2085 = vadd.f32 %v2062, %v2083
    %2086 = vrot.lane.b32.xlu0 %v1358, 112
    %v2087 = vpop.permute.xlu0 %2086
    %2088 = vrot.lane.b32.xlu0 %v1359, 112
    %v2089 = vpop.permute.xlu0 %2088
    %v2090 = vsel %vm923, %v2087, %v2089
    %v2091 = vsel %vm923, %v2089, %v2087
    %s2092 = scalar_lea.vmem %s0, 160
    %v2093 = vld [vmem:[%s2092] ss:$8 sm:$0x3]
    %v2095 = vlaneseq
    %v2096 = vshrl.u32 %v2095, 7
    %v2097 = vsub.s32 0, %v2096
    %v2098 = vrot.slane %v2093, %v2097
    %v2099 = vlaneseq
    %v2100 = vshrl.u32 %v2099, 7
    %v2101 = vsub.s32 1, %v2100
    %v2102 = vrot.slane %v2093, %v2101
    %v2105 = vmul.f32 %v2090, %v2098
    %v2106 = vmul.f32 %v2091, %v2102
    %v2107 = vadd.f32 %v2084, %v2105
    %v2108 = vadd.f32 %v2085, %v2106
    %2109 = vrot.lane.b32.xlu0 %v1358, 111
    %v2110 = vpop.permute.xlu0 %2109
    %2111 = vrot.lane.b32.xlu0 %v1359, 111
    %v2112 = vpop.permute.xlu0 %2111
    %v2113 = vsel %vm947, %v2110, %v2112
    %v2114 = vsel %vm947, %v2112, %v2110
    %s2115 = scalar_lea.vmem %s0, 161
    %v2116 = vld [vmem:[%s2115] ss:$8 sm:$0x3]
    %v2118 = vlaneseq
    %v2119 = vshrl.u32 %v2118, 7
    %v2120 = vsub.s32 0, %v2119
    %v2121 = vrot.slane %v2116, %v2120
    %v2122 = vlaneseq
    %v2123 = vshrl.u32 %v2122, 7
    %v2124 = vsub.s32 1, %v2123
    %v2125 = vrot.slane %v2116, %v2124
    %v2128 = vmul.f32 %v2113, %v2121
    %v2129 = vmul.f32 %v2114, %v2125
    %v2130 = vadd.f32 %v2107, %v2128
    %v2131 = vadd.f32 %v2108, %v2129
    %2132 = vrot.lane.b32.xlu0 %v1358, 110
    %v2133 = vpop.permute.xlu0 %2132
    %2134 = vrot.lane.b32.xlu0 %v1359, 110
    %v2135 = vpop.permute.xlu0 %2134
    %v2136 = vsel %vm971, %v2133, %v2135
    %v2137 = vsel %vm971, %v2135, %v2133
    %s2138 = scalar_lea.vmem %s0, 162
    %v2139 = vld [vmem:[%s2138] ss:$8 sm:$0x3]
    %v2141 = vlaneseq
    %v2142 = vshrl.u32 %v2141, 7
    %v2143 = vsub.s32 0, %v2142
    %v2144 = vrot.slane %v2139, %v2143
    %v2145 = vlaneseq
    %v2146 = vshrl.u32 %v2145, 7
    %v2147 = vsub.s32 1, %v2146
    %v2148 = vrot.slane %v2139, %v2147
    %v2151 = vmul.f32 %v2136, %v2144
    %v2152 = vmul.f32 %v2137, %v2148
    %v2153 = vadd.f32 %v2130, %v2151
    %v2154 = vadd.f32 %v2131, %v2152
    %2155 = vrot.lane.b32.xlu0 %v1358, 109
    %v2156 = vpop.permute.xlu0 %2155
    %2157 = vrot.lane.b32.xlu0 %v1359, 109
    %v2158 = vpop.permute.xlu0 %2157
    %v2159 = vsel %vm995, %v2156, %v2158
    %v2160 = vsel %vm995, %v2158, %v2156
    %s2161 = scalar_lea.vmem %s0, 163
    %v2162 = vld [vmem:[%s2161] ss:$8 sm:$0x3]
    %v2164 = vlaneseq
    %v2165 = vshrl.u32 %v2164, 7
    %v2166 = vsub.s32 0, %v2165
    %v2167 = vrot.slane %v2162, %v2166
    %v2168 = vlaneseq
    %v2169 = vshrl.u32 %v2168, 7
    %v2170 = vsub.s32 1, %v2169
    %v2171 = vrot.slane %v2162, %v2170
    %v2174 = vmul.f32 %v2159, %v2167
    %v2175 = vmul.f32 %v2160, %v2171
    %v2176 = vadd.f32 %v2153, %v2174
    %v2177 = vadd.f32 %v2154, %v2175
    %2178 = vrot.lane.b32.xlu0 %v1358, 99
    %v2179 = vpop.permute.xlu0 %2178
    %2180 = vrot.lane.b32.xlu0 %v1359, 99
    %v2181 = vpop.permute.xlu0 %2180
    %v2182 = vsel %vm1019, %v2179, %v2181
    %v2183 = vsel %vm1019, %v2181, %v2179
    %s2184 = scalar_lea.vmem %s0, 164
    %v2185 = vld [vmem:[%s2184] ss:$8 sm:$0x3]
    %v2187 = vlaneseq
    %v2188 = vshrl.u32 %v2187, 7
    %v2189 = vsub.s32 0, %v2188
    %v2190 = vrot.slane %v2185, %v2189
    %v2191 = vlaneseq
    %v2192 = vshrl.u32 %v2191, 7
    %v2193 = vsub.s32 1, %v2192
    %v2194 = vrot.slane %v2185, %v2193
    %v2197 = vmul.f32 %v2182, %v2190
    %v2198 = vmul.f32 %v2183, %v2194
    %v2199 = vadd.f32 %v2176, %v2197
    %v2200 = vadd.f32 %v2177, %v2198
    %2201 = vrot.lane.b32.xlu0 %v1358, 98
    %v2202 = vpop.permute.xlu0 %2201
    %2203 = vrot.lane.b32.xlu0 %v1359, 98
    %v2204 = vpop.permute.xlu0 %2203
    %v2205 = vsel %vm1043, %v2202, %v2204
    %v2206 = vsel %vm1043, %v2204, %v2202
    %s2207 = scalar_lea.vmem %s0, 165
    %v2208 = vld [vmem:[%s2207] ss:$8 sm:$0x3]
    %v2210 = vlaneseq
    %v2211 = vshrl.u32 %v2210, 7
    %v2212 = vsub.s32 0, %v2211
    %v2213 = vrot.slane %v2208, %v2212
    %v2214 = vlaneseq
    %v2215 = vshrl.u32 %v2214, 7
    %v2216 = vsub.s32 1, %v2215
    %v2217 = vrot.slane %v2208, %v2216
    %v2220 = vmul.f32 %v2205, %v2213
    %v2221 = vmul.f32 %v2206, %v2217
    %v2222 = vadd.f32 %v2199, %v2220
    %v2223 = vadd.f32 %v2200, %v2221
    %2224 = vrot.lane.b32.xlu0 %v1358, 97
    %v2225 = vpop.permute.xlu0 %2224
    %2226 = vrot.lane.b32.xlu0 %v1359, 97
    %v2227 = vpop.permute.xlu0 %2226
    %v2228 = vsel %vm1067, %v2225, %v2227
    %v2229 = vsel %vm1067, %v2227, %v2225
    %s2230 = scalar_lea.vmem %s0, 166
    %v2231 = vld [vmem:[%s2230] ss:$8 sm:$0x3]
    %v2233 = vlaneseq
    %v2234 = vshrl.u32 %v2233, 7
    %v2235 = vsub.s32 0, %v2234
    %v2236 = vrot.slane %v2231, %v2235
    %v2237 = vlaneseq
    %v2238 = vshrl.u32 %v2237, 7
    %v2239 = vsub.s32 1, %v2238
    %v2240 = vrot.slane %v2231, %v2239
    %v2243 = vmul.f32 %v2228, %v2236
    %v2244 = vmul.f32 %v2229, %v2240
    %v2245 = vadd.f32 %v2222, %v2243
    %v2246 = vadd.f32 %v2223, %v2244
    %2247 = vrot.lane.b32.xlu0 %v1358, 96
    %v2248 = vpop.permute.xlu0 %2247
    %2249 = vrot.lane.b32.xlu0 %v1359, 96
    %v2250 = vpop.permute.xlu0 %2249
    %v2251 = vsel %vm1091, %v2248, %v2250
    %v2252 = vsel %vm1091, %v2250, %v2248
    %s2253 = scalar_lea.vmem %s0, 167
    %v2254 = vld [vmem:[%s2253] ss:$8 sm:$0x3]
    %v2256 = vlaneseq
    %v2257 = vshrl.u32 %v2256, 7
    %v2258 = vsub.s32 0, %v2257
    %v2259 = vrot.slane %v2254, %v2258
    %v2260 = vlaneseq
    %v2261 = vshrl.u32 %v2260, 7
    %v2262 = vsub.s32 1, %v2261
    %v2263 = vrot.slane %v2254, %v2262
    %v2266 = vmul.f32 %v2251, %v2259
    %v2267 = vmul.f32 %v2252, %v2263
    %v2268 = vadd.f32 %v2245, %v2266
    %v2269 = vadd.f32 %v2246, %v2267
    %2270 = vrot.lane.b32.xlu0 %v1358, 95
    %v2271 = vpop.permute.xlu0 %2270
    %2272 = vrot.lane.b32.xlu0 %v1359, 95
    %v2273 = vpop.permute.xlu0 %2272
    %v2274 = vsel %vm1115, %v2271, %v2273
    %v2275 = vsel %vm1115, %v2273, %v2271
    %s2276 = scalar_lea.vmem %s0, 176
    %v2277 = vld [vmem:[%s2276] ss:$8 sm:$0x3]
    %v2279 = vlaneseq
    %v2280 = vshrl.u32 %v2279, 7
    %v2281 = vsub.s32 0, %v2280
    %v2282 = vrot.slane %v2277, %v2281
    %v2283 = vlaneseq
    %v2284 = vshrl.u32 %v2283, 7
    %v2285 = vsub.s32 1, %v2284
    %v2286 = vrot.slane %v2277, %v2285
    %v2289 = vmul.f32 %v2274, %v2282
    %v2290 = vmul.f32 %v2275, %v2286
    %v2291 = vadd.f32 %v2268, %v2289
    %v2292 = vadd.f32 %v2269, %v2290
    %2293 = vrot.lane.b32.xlu0 %v1358, 94
    %v2294 = vpop.permute.xlu0 %2293
    %2295 = vrot.lane.b32.xlu0 %v1359, 94
    %v2296 = vpop.permute.xlu0 %2295
    %v2297 = vsel %vm1139, %v2294, %v2296
    %v2298 = vsel %vm1139, %v2296, %v2294
    %s2299 = scalar_lea.vmem %s0, 177
    %v2300 = vld [vmem:[%s2299] ss:$8 sm:$0x3]
    %v2302 = vlaneseq
    %v2303 = vshrl.u32 %v2302, 7
    %v2304 = vsub.s32 0, %v2303
    %v2305 = vrot.slane %v2300, %v2304
    %v2306 = vlaneseq
    %v2307 = vshrl.u32 %v2306, 7
    %v2308 = vsub.s32 1, %v2307
    %v2309 = vrot.slane %v2300, %v2308
    %v2312 = vmul.f32 %v2297, %v2305
    %v2313 = vmul.f32 %v2298, %v2309
    %v2314 = vadd.f32 %v2291, %v2312
    %v2315 = vadd.f32 %v2292, %v2313
    %2316 = vrot.lane.b32.xlu0 %v1358, 93
    %v2317 = vpop.permute.xlu0 %2316
    %2318 = vrot.lane.b32.xlu0 %v1359, 93
    %v2319 = vpop.permute.xlu0 %2318
    %v2320 = vsel %vm1163, %v2317, %v2319
    %v2321 = vsel %vm1163, %v2319, %v2317
    %s2322 = scalar_lea.vmem %s0, 178
    %v2323 = vld [vmem:[%s2322] ss:$8 sm:$0x3]
    %v2325 = vlaneseq
    %v2326 = vshrl.u32 %v2325, 7
    %v2327 = vsub.s32 0, %v2326
    %v2328 = vrot.slane %v2323, %v2327
    %v2329 = vlaneseq
    %v2330 = vshrl.u32 %v2329, 7
    %v2331 = vsub.s32 1, %v2330
    %v2332 = vrot.slane %v2323, %v2331
    %v2335 = vmul.f32 %v2320, %v2328
    %v2336 = vmul.f32 %v2321, %v2332
    %v2337 = vadd.f32 %v2314, %v2335
    %v2338 = vadd.f32 %v2315, %v2336
    %2339 = vrot.lane.b32.xlu0 %v1358, 83
    %v2340 = vpop.permute.xlu0 %2339
    %2341 = vrot.lane.b32.xlu0 %v1359, 83
    %v2342 = vpop.permute.xlu0 %2341
    %v2343 = vsel %vm1187, %v2340, %v2342
    %v2344 = vsel %vm1187, %v2342, %v2340
    %s2345 = scalar_lea.vmem %s0, 179
    %v2346 = vld [vmem:[%s2345] ss:$8 sm:$0x3]
    %v2348 = vlaneseq
    %v2349 = vshrl.u32 %v2348, 7
    %v2350 = vsub.s32 0, %v2349
    %v2351 = vrot.slane %v2346, %v2350
    %v2352 = vlaneseq
    %v2353 = vshrl.u32 %v2352, 7
    %v2354 = vsub.s32 1, %v2353
    %v2355 = vrot.slane %v2346, %v2354
    %v2358 = vmul.f32 %v2343, %v2351
    %v2359 = vmul.f32 %v2344, %v2355
    %v2360 = vadd.f32 %v2337, %v2358
    %v2361 = vadd.f32 %v2338, %v2359
    %2362 = vrot.lane.b32.xlu0 %v1358, 82
    %v2363 = vpop.permute.xlu0 %2362
    %2364 = vrot.lane.b32.xlu0 %v1359, 82
    %v2365 = vpop.permute.xlu0 %2364
    %v2366 = vsel %vm1211, %v2363, %v2365
    %v2367 = vsel %vm1211, %v2365, %v2363
    %s2368 = scalar_lea.vmem %s0, 180
    %v2369 = vld [vmem:[%s2368] ss:$8 sm:$0x3]
    %v2371 = vlaneseq
    %v2372 = vshrl.u32 %v2371, 7
    %v2373 = vsub.s32 0, %v2372
    %v2374 = vrot.slane %v2369, %v2373
    %v2375 = vlaneseq
    %v2376 = vshrl.u32 %v2375, 7
    %v2377 = vsub.s32 1, %v2376
    %v2378 = vrot.slane %v2369, %v2377
    %v2381 = vmul.f32 %v2366, %v2374
    %v2382 = vmul.f32 %v2367, %v2378
    %v2383 = vadd.f32 %v2360, %v2381
    %v2384 = vadd.f32 %v2361, %v2382
    %2385 = vrot.lane.b32.xlu0 %v1358, 81
    %v2386 = vpop.permute.xlu0 %2385
    %2387 = vrot.lane.b32.xlu0 %v1359, 81
    %v2388 = vpop.permute.xlu0 %2387
    %v2389 = vsel %vm1235, %v2386, %v2388
    %v2390 = vsel %vm1235, %v2388, %v2386
    %s2391 = scalar_lea.vmem %s0, 181
    %v2392 = vld [vmem:[%s2391] ss:$8 sm:$0x3]
    %v2394 = vlaneseq
    %v2395 = vshrl.u32 %v2394, 7
    %v2396 = vsub.s32 0, %v2395
    %v2397 = vrot.slane %v2392, %v2396
    %v2398 = vlaneseq
    %v2399 = vshrl.u32 %v2398, 7
    %v2400 = vsub.s32 1, %v2399
    %v2401 = vrot.slane %v2392, %v2400
    %v2404 = vmul.f32 %v2389, %v2397
    %v2405 = vmul.f32 %v2390, %v2401
    %v2406 = vadd.f32 %v2383, %v2404
    %v2407 = vadd.f32 %v2384, %v2405
    %2408 = vrot.lane.b32.xlu0 %v1358, 80
    %v2409 = vpop.permute.xlu0 %2408
    %2410 = vrot.lane.b32.xlu0 %v1359, 80
    %v2411 = vpop.permute.xlu0 %2410
    %v2412 = vsel %vm1259, %v2409, %v2411
    %v2413 = vsel %vm1259, %v2411, %v2409
    %s2414 = scalar_lea.vmem %s0, 182
    %v2415 = vld [vmem:[%s2414] ss:$8 sm:$0x3]
    %v2417 = vlaneseq
    %v2418 = vshrl.u32 %v2417, 7
    %v2419 = vsub.s32 0, %v2418
    %v2420 = vrot.slane %v2415, %v2419
    %v2421 = vlaneseq
    %v2422 = vshrl.u32 %v2421, 7
    %v2423 = vsub.s32 1, %v2422
    %v2424 = vrot.slane %v2415, %v2423
    %v2427 = vmul.f32 %v2412, %v2420
    %v2428 = vmul.f32 %v2413, %v2424
    %v2429 = vadd.f32 %v2406, %v2427
    %v2430 = vadd.f32 %v2407, %v2428
    %2431 = vrot.lane.b32.xlu0 %v1358, 79
    %v2432 = vpop.permute.xlu0 %2431
    %2433 = vrot.lane.b32.xlu0 %v1359, 79
    %v2434 = vpop.permute.xlu0 %2433
    %v2435 = vsel %vm1283, %v2432, %v2434
    %v2436 = vsel %vm1283, %v2434, %v2432
    %s2437 = scalar_lea.vmem %s0, 183
    %v2438 = vld [vmem:[%s2437] ss:$8 sm:$0x3]
    %v2440 = vlaneseq
    %v2441 = vshrl.u32 %v2440, 7
    %v2442 = vsub.s32 0, %v2441
    %v2443 = vrot.slane %v2438, %v2442
    %v2444 = vlaneseq
    %v2445 = vshrl.u32 %v2444, 7
    %v2446 = vsub.s32 1, %v2445
    %v2447 = vrot.slane %v2438, %v2446
    %v2450 = vmul.f32 %v2435, %v2443
    %v2451 = vmul.f32 %v2436, %v2447
    %v2452 = vadd.f32 %v2429, %v2450
    %v2453 = vadd.f32 %v2430, %v2451
    %2454 = vrot.lane.b32.xlu0 %v1358, 78
    %v2455 = vpop.permute.xlu0 %2454
    %2456 = vrot.lane.b32.xlu0 %v1359, 78
    %v2457 = vpop.permute.xlu0 %2456
    %v2458 = vsel %vm1307, %v2455, %v2457
    %v2459 = vsel %vm1307, %v2457, %v2455
    %s2460 = scalar_lea.vmem %s0, 192
    %v2461 = vld [vmem:[%s2460] ss:$8 sm:$0x3]
    %v2463 = vlaneseq
    %v2464 = vshrl.u32 %v2463, 7
    %v2465 = vsub.s32 0, %v2464
    %v2466 = vrot.slane %v2461, %v2465
    %v2467 = vlaneseq
    %v2468 = vshrl.u32 %v2467, 7
    %v2469 = vsub.s32 1, %v2468
    %v2470 = vrot.slane %v2461, %v2469
    %v2473 = vmul.f32 %v2458, %v2466
    %v2474 = vmul.f32 %v2459, %v2470
    %v2475 = vadd.f32 %v2452, %v2473
    %v2476 = vadd.f32 %v2453, %v2474
    %2477 = vrot.lane.b32.xlu0 %v1358, 77
    %v2478 = vpop.permute.xlu0 %2477
    %2479 = vrot.lane.b32.xlu0 %v1359, 77
    %v2480 = vpop.permute.xlu0 %2479
    %v2481 = vsel %vm1331, %v2478, %v2480
    %v2482 = vsel %vm1331, %v2480, %v2478
    %s2483 = scalar_lea.vmem %s0, 193
    %v2484 = vld [vmem:[%s2483] ss:$8 sm:$0x3]
    %v2486 = vlaneseq
    %v2487 = vshrl.u32 %v2486, 7
    %v2488 = vsub.s32 0, %v2487
    %v2489 = vrot.slane %v2484, %v2488
    %v2490 = vlaneseq
    %v2491 = vshrl.u32 %v2490, 7
    %v2492 = vsub.s32 1, %v2491
    %v2493 = vrot.slane %v2484, %v2492
    %v2496 = vmul.f32 %v2481, %v2489
    %v2497 = vmul.f32 %v2482, %v2493
    %v2498 = vadd.f32 %v2475, %v2496
    %v2499 = vadd.f32 %v2476, %v2497
    %v2500 = vxor.u32 %v2498, 2147483648
    %v2501 = vxor.u32 %v2499, 2147483648
    %v2502 = vmul.f32 %v2500, 1.442695
    %v2503 = vpow.pop %v2502
    %v2504 = vmul.f32 %v2501, 1.442695
    %v2505 = vpow.pop %v2504
    %v2506 = vadd.f32 %v2503, 1.0
    %v2507 = vadd.f32 %v2505, 1.0
    %v2508 = vrcp.pop %v2506
    %v2509 = vmul.f32 1.0, %v2508
    %v2510 = vrcp.pop %v2507
    %v2511 = vmul.f32 1.0, %v2510
    %v2514 = vcombine.low %v2509, %v2511
    %v2516 = vunpack.c.l.s4 1983009808
    %v2517 = vunpack.c.0.s8 %v2516
    %v2518 = vlaneseq
    %v2519 = vshrl.u32 %v2518, 7
    %v2520 = vsub.s32 %v2517, %v2519
    %v2521 = vrot.slane %v2514, %v2520
    %2523 = vst [vmem:[%s2] sm:$0xf] %v2521
  $region17: #{spatial_attention.1} parent=0 // pred_fallthru
    _
  // Predicated region
  $region18: #{spatial_attention.1} parent=0 // pred_check
    _
  $region19: #{spatial_attention.1} parent=0 // pred_check_branch
    %2525 = sbr.rel (0) target = $region21
  $region20: #{spatial_attention.1} parent=0 // pred_region
    _
  $region21: #{spatial_attention.1} parent=0 // pred_fallthru
    _
  // Predicated region
  $region22: #{spatial_attention.1} parent=0 // pred_check
    _
  $region23: #{spatial_attention.1} parent=0 // pred_check_branch
    %2527 = sbr.rel (0) target = $region25
  $region24: #{spatial_attention.1} parent=0 // pred_region
    _
  $region25: #{spatial_attention.1} parent=0 // pred_fallthru
    _

</llo_original>
